<compile_context>
chip_gen: v7x
topology: tpu7x:2x2x1
jax: 0.10.0
libtpu: 0.0.40
codegen_flags: <defaults>
</compile_context>

<pallas_src>
import functools

import jax
import jax.numpy as jnp
from jax import lax
from jax.experimental import pallas as pl
from jax.experimental.pallas import tpu as pltpu

BN_EPS = 1e-5
LANE = 128
TILE_M = 128                      # im2col rows per grid step (raise for big inputs)
VMEM_LIMIT = 32 * 1024 * 1024     # explicit budget; safe for v7x (64 MiB physical)

_COMPILER_PARAMS = pltpu.CompilerParams(
    dimension_semantics=("parallel",),
    vmem_limit_bytes=VMEM_LIMIT,
)


def _round_up(x, m):
    return (x + m - 1) // m * m


# ------------------------------ Pallas kernels -------------------------------
def _mm_stats_kernel(cols_ref, w_ref, y_ref, stats_ref):
    """bf16 matmul (f32 accumulate) + per-tile channel sum / sum-of-squares."""
    y = jnp.dot(cols_ref[...], w_ref[...], preferred_element_type=jnp.float32)
    y_ref[...] = y
    s = jnp.sum(y, axis=0, keepdims=True)            # (1, Cp)
    ss = jnp.sum(y * y, axis=0, keepdims=True)       # (1, Cp)
    pad = jnp.zeros((6, y.shape[1]), jnp.float32)    # sublane-pad stats rows to 8
    stats_ref[...] = jnp.concatenate([s, ss, pad], axis=0)[None]


def _scale_shift_relu_kernel(y_ref, scale_ref, shift_ref, o_ref):
    """Folded BatchNorm affine + ReLU (f32 math), bf16 store."""
    o_ref[...] = jnp.maximum(
        y_ref[...] * scale_ref[...] + shift_ref[...], 0.0).astype(o_ref.dtype)


def _mm_bias_kernel(cols_ref, w_ref, b_ref, o_ref, *, relu):
    """bf16 matmul (f32 accumulate) + bias (+ optional ReLU)."""
    y = jnp.dot(cols_ref[...], w_ref[...], preferred_element_type=jnp.float32)
    y = y + b_ref[...]
    if relu:
        y = jnp.maximum(y, 0.0)
    o_ref[...] = y.astype(o_ref.dtype)


# --------------------------------- JAX glue ----------------------------------
def _im2col(x_nhwc, kh, kw, sh, sw, ph, pw):
    N, H, W, C = x_nhwc.shape
    xp = jnp.pad(x_nhwc, ((0, 0), (ph, ph), (pw, pw), (0, 0)))
    Ho = (H + 2 * ph - kh) // sh + 1
    Wo = (W + 2 * pw - kw) // sw + 1
    patches = []
    for i in range(kh):
        for j in range(kw):
            patches.append(xp[:, i:i + sh * Ho:sh, j:j + sw * Wo:sw, :])
    cols = jnp.concatenate(patches, axis=-1)          # (N, Ho, Wo, KH*KW*C)
    return cols.reshape(N * Ho * Wo, kh * kw * C), (N, Ho, Wo)


def _prep_matmul_operands(x_nhwc, w_oihw, stride, padding, tile_m):
    """im2col in bf16 + zero-pad M / K / Cout to MXU / lane friendly sizes."""
    cout, cin, kh, kw = w_oihw.shape
    cols, (N, Ho, Wo) = _im2col(x_nhwc.astype(jnp.bfloat16), kh, kw,
                                stride[0], stride[1], padding[0], padding[1])
    M, K = cols.shape
    Mp = _round_up(M, tile_m)
    Kp = _round_up(K, LANE)
    Cp = _round_up(cout, LANE)
    cols_p = jnp.pad(cols, ((0, Mp - M), (0, Kp - K)))
    # (Cout, Cin, KH, KW) -> (KH, KW, Cin, Cout) -> (KH*KW*Cin, Cout)  (matches
    # the (kh, kw, cin) ordering produced by _im2col above).
    w2d = jnp.transpose(w_oihw, (2, 3, 1, 0)).reshape(K, cout)
    w2d_p = jnp.pad(w2d.astype(jnp.bfloat16), ((0, Kp - K), (0, Cp - cout)))
    dims = dict(N=N, Ho=Ho, Wo=Wo, M=M, Mp=Mp, Kp=Kp, Cp=Cp, cout=cout)
    return cols_p, w2d_p, dims


def conv_bn_relu_pallas(x_nhwc, w_oihw, gamma, beta, *, stride, padding,
                        tile_m=TILE_M):
    """Conv2d -> training-mode BatchNorm2d -> ReLU, M-tiled on the MXU.

    The conv bias is omitted on purpose: training-mode BN subtracts the batch
    mean per channel, which cancels any per-channel bias exactly.
    """
    cols_p, w_p, d = _prep_matmul_operands(x_nhwc, w_oihw, stride, padding,
                                           tile_m)
    Mp, Kp, Cp, M, cout = d['Mp'], d['Kp'], d['Cp'], d['M'], d['cout']
    n_tiles = Mp // tile_m

    # Pass 1: tiled matmul + per-tile partial BN statistics (M axis parallel).
    y, stats = pl.pallas_call(
        _mm_stats_kernel,
        out_shape=(jax.ShapeDtypeStruct((Mp, Cp), jnp.float32),
                   jax.ShapeDtypeStruct((n_tiles, 8, Cp), jnp.float32)),
        grid=(n_tiles,),
        in_specs=[pl.BlockSpec((tile_m, Kp), lambda i: (i, 0)),
                  pl.BlockSpec((Kp, Cp), lambda i: (0, 0))],
        out_specs=(pl.BlockSpec((tile_m, Cp), lambda i: (i, 0)),
                   pl.BlockSpec((1, 8, Cp), lambda i: (i, 0, 0))),
        compiler_params=_COMPILER_PARAMS,
    )(cols_p, w_p)

    # Tiny cross-tile reduction + BN folding (scale/shift) in plain JAX.
    # Padded rows of cols are all-zero -> contribute exactly 0 to sum/sumsq,
    # so dividing by the real row count M is exact.
    total = jnp.sum(stats, axis=0)                    # (8, Cp)
    mean = total[0] / float(M)
    var = jnp.maximum(total[1] / float(M) - mean * mean, 0.0)
    inv_std = lax.rsqrt(var + BN_EPS)
    gamma_p = jnp.pad(gamma.astype(jnp.float32), (0, Cp - cout),
                      constant_values=1.0)
    beta_p = jnp.pad(beta.astype(jnp.float32), (0, Cp - cout))
    scale = (gamma_p * inv_std).reshape(1, Cp)
    shift = (beta_p - mean * gamma_p * inv_std).reshape(1, Cp)

    # Pass 2: apply affine + ReLU, emit bf16 activations for the next conv.
    act = pl.pallas_call(
        _scale_shift_relu_kernel,
        out_shape=jax.ShapeDtypeStruct((Mp, Cp), jnp.bfloat16),
        grid=(n_tiles,),
        in_specs=[pl.BlockSpec((tile_m, Cp), lambda i: (i, 0)),
                  pl.BlockSpec((1, Cp), lambda i: (0, 0)),
                  pl.BlockSpec((1, Cp), lambda i: (0, 0))],
        out_specs=pl.BlockSpec((tile_m, Cp), lambda i: (i, 0)),
        compiler_params=_COMPILER_PARAMS,
    )(y, scale, shift)

    return act[:M, :cout].reshape(d['N'], d['Ho'], d['Wo'], cout)


def conv_bias_pallas(x_nhwc, w_oihw, b, *, stride, padding, relu=False,
                     tile_m=TILE_M):
    """Plain Conv2d (+bias, optional ReLU), M-tiled, lane-dense padded Cout."""
    cols_p, w_p, d = _prep_matmul_operands(x_nhwc, w_oihw, stride, padding,
                                           tile_m)
    Mp, Kp, Cp, M, cout = d['Mp'], d['Kp'], d['Cp'], d['M'], d['cout']
    n_tiles = Mp // tile_m
    b_p = jnp.pad(b.astype(jnp.float32), (0, Cp - cout)).reshape(1, Cp)

    out = pl.pallas_call(
        functools.partial(_mm_bias_kernel, relu=relu),
        out_shape=jax.ShapeDtypeStruct((Mp, Cp), jnp.float32),
        grid=(n_tiles,),
        in_specs=[pl.BlockSpec((tile_m, Kp), lambda i: (i, 0)),
                  pl.BlockSpec((Kp, Cp), lambda i: (0, 0)),
                  pl.BlockSpec((1, Cp), lambda i: (0, 0))],
        out_specs=pl.BlockSpec((tile_m, Cp), lambda i: (i, 0)),
        compiler_params=_COMPILER_PARAMS,
    )(cols_p, w_p, b_p)

    return out[:M, :cout].reshape(d['N'], d['Ho'], d['Wo'], cout)


def cnn_onset_forward(params, x_nchw, n_nchw):
    """Pallas-backed forward of CNN_Onset. Inputs/outputs are NCHW (f32)."""
    x = jnp.transpose(x_nchw, (0, 2, 3, 1))              # NHWC
    n = jnp.transpose(n_nchw, (0, 2, 3, 1))              # NHWC

    h = conv_bn_relu_pallas(x, params['w1'], params['g1'], params['bt1'],
                            stride=(3, 1), padding=(2, 2))
    h = jnp.concatenate([h, n.astype(h.dtype)], axis=-1)  # cat(dim=1) in NHWC
    h = conv_bn_relu_pallas(h, params['w2'], params['g2'], params['bt2'],
                            stride=(1, 1), padding=(1, 1))
    out = conv_bias_pallas(h, params['w3'], params['b3'],
                           stride=(1, 1), padding=(1, 1), relu=False)
    return jnp.transpose(out, (0, 3, 1, 2)).astype(jnp.float32)  # NCHW


# ----------------------------- pure-JAX reference ----------------------------
# Reference mirrors the kernel's numeric contract: bf16 conv inputs with f32
# accumulation (MXU-native), f32 BatchNorm/ReLU epilogue.
def _ref_conv(x_nchw, w, b, stride, padding):
    out = lax.conv_general_dilated(
        x_nchw.astype(jnp.bfloat16), w.astype(jnp.bfloat16),
        window_strides=stride,
        padding=[(padding[0], padding[0]), (padding[1], padding[1])],
        dimension_numbers=('NCHW', 'OIHW', 'NCHW'),
        preferred_element_type=jnp.float32)
    return out + b.reshape(1, -1, 1, 1).astype(jnp.float32)


def _ref_bn(x_nchw, gamma, beta):
    mean = jnp.mean(x_nchw, axis=(0, 2, 3), keepdims=True)
    var = jnp.mean((x_nchw - mean) ** 2, axis=(0, 2, 3), keepdims=True)
    return ((x_nchw - mean) * lax.rsqrt(var + BN_EPS)
            * gamma.reshape(1, -1, 1, 1) + beta.reshape(1, -1, 1, 1))


def reference_forward(params, x, n):
    h = _ref_conv(x, params['w1'], params['b1'], (3, 1), (2, 2))
    h = jnp.maximum(_ref_bn(h, params['g1'], params['bt1']), 0.0)
    h = jnp.concatenate([h, n.astype(jnp.float32)], axis=1)
    h = _ref_conv(h, params['w2'], params['b2'], (1, 1), (1, 1))
    h = jnp.maximum(_ref_bn(h, params['g2'], params['bt2']), 0.0)
    h = _ref_conv(h, params['w3'], params['b3'], (1, 1), (1, 1))
    return h


# ------------------------------------ main -----------------------------------
if __name__ == "__main__":
    key = jax.random.PRNGKey(0)
    ks = jax.random.split(key, 8)
    in_c = 4

    params = {
        'w1': jax.random.normal(ks[0], (64, in_c, 5, 5), jnp.float32) * 0.05,
        'b1': jax.random.normal(ks[1], (64,), jnp.float32) * 0.05,
        'g1': jnp.ones((64,), jnp.float32),
        'bt1': jnp.zeros((64,), jnp.float32),
        'w2': jax.random.normal(ks[2], (32, 65, 3, 3), jnp.float32) * 0.05,
        'b2': jax.random.normal(ks[3], (32,), jnp.float32) * 0.05,
        'g2': jnp.ones((32,), jnp.float32),
        'bt2': jnp.zeros((32,), jnp.float32),
        'w3': jax.random.normal(ks[4], (1, 32, 3, 3), jnp.float32) * 0.05,
        'b3': jax.random.normal(ks[5], (1,), jnp.float32) * 0.05,
    }

    # x: (N, C_in, H, W); n: (N, 1, H_out, W_out) with H_out = (H+4-5)//3 + 1
    x = jax.random.normal(ks[6], (2, in_c, 16, 16), jnp.float32)
    n = jax.random.normal(ks[7], (2, 1, 6, 16), jnp.float32)

    fwd = jax.jit(cnn_onset_forward)
    out = jax.block_until_ready(fwd(params, x, n))
    ref = jax.block_until_ready(reference_forward(params, x, n))

    assert out.shape == (2, 1, 6, 16), out.shape
    max_err = float(jnp.max(jnp.abs(out - ref)))
    assert jnp.allclose(out, ref, atol=5e-3, rtol=5e-3), max_err

    print("KERNEL_OK")
</pallas_src>

<mosaic_0001>
module attributes {stable_mosaic.version = 11 : i64} {
  func.func @_mm_stats_kernel(%arg0: i32, %arg1: memref<128x128xbf16, #tpu.memory_space<vmem>>, %arg2: memref<128x128xbf16, #tpu.memory_space<vmem>>, %arg3: memref<128x128xf32, #tpu.memory_space<vmem>>, %arg4: memref<1x8x128xf32, #tpu.memory_space<vmem>>) attributes {dimension_semantics = [#tpu.dimension_semantics<parallel>], iteration_bounds = array<i64: 2>, scalar_prefetch = 0 : i64, scratch_operands = 0 : i64, tpu.core_type = #tpu.core_type<tc>, window_params = [{transform_indices = @transform_0, window_bounds = array<i64: 128, 128>}, {pipeline_mode = #tpu.pipeline_mode<synchronous>, transform_indices = @transform_1, window_bounds = array<i64: 128, 128>}, {transform_indices = @transform_2, window_bounds = array<i64: 128, 128>}, {transform_indices = @transform_3, window_bounds = array<i64: 1, 8, 128>}]} {
    %c0 = arith.constant 0 : index
    %c0_0 = arith.constant 0 : index
    %0 = vector.load %arg1[%c0, %c0_0] : memref<128x128xbf16, #tpu.memory_space<vmem>>, vector<128x128xbf16>
    %c0_1 = arith.constant 0 : index
    %c0_2 = arith.constant 0 : index
    %1 = vector.load %arg2[%c0_1, %c0_2] : memref<128x128xbf16, #tpu.memory_space<vmem>>, vector<128x128xbf16>
    %cst = arith.constant dense<0.000000e+00> : vector<128x128xf32>
    %2 = tpu.matmul %0, %1, %cst {dimension_numbers = #tpu.dot_dimension_numbers<[1], [0], [0], [1], [0, 0, 1, 1], [], []>} : vector<128x128xbf16>, vector<128x128xbf16>, vector<128x128xf32> -> vector<128x128xf32>
    %c0_3 = arith.constant 0 : index
    %c0_4 = arith.constant 0 : index
    %3 = vector.load %arg3[%c0_3, %c0_4] : memref<128x128xf32, #tpu.memory_space<vmem>>, vector<128x128xf32>
    tpu.vector_store %arg3[%c0_3, %c0_4], %2 {strides = array<i32>} : memref<128x128xf32, #tpu.memory_space<vmem>>, vector<128x128xf32>,
    %cst_5 = arith.constant dense<0.000000e+00> : vector<128xf32>
    %4 = vector.multi_reduction <add>, %2, %cst_5 [0] : vector<128x128xf32> to vector<128xf32>
    %5 = vector.shape_cast %4 : vector<128xf32> to vector<1x128xf32>
    %6 = arith.mulf %2, %2 : vector<128x128xf32>
    %cst_6 = arith.constant dense<0.000000e+00> : vector<128xf32>
    %7 = vector.multi_reduction <add>, %6, %cst_6 [0] : vector<128x128xf32> to vector<128xf32>
    %8 = vector.shape_cast %7 : vector<128xf32> to vector<1x128xf32>
    %cst_7 = arith.constant 0.000000e+00 : f32
    %9 = vector.broadcast %cst_7 : f32 to vector<6x128xf32>
    %10 = tpu.concatenate %5, %8, %9 in 0 : vector<1x128xf32>, vector<1x128xf32>, vector<6x128xf32> -> vector<8x128xf32>
    %11 = vector.shape_cast %10 : vector<8x128xf32> to vector<1x8x128xf32>
    %c0_8 = arith.constant 0 : index
    %c0_9 = arith.constant 0 : index
    %c0_10 = arith.constant 0 : index
    %12 = vector.load %arg4[%c0_8, %c0_9, %c0_10] : memref<1x8x128xf32, #tpu.memory_space<vmem>>, vector<1x8x128xf32>
    tpu.vector_store %arg4[%c0_8, %c0_9, %c0_10], %11 {strides = array<i32>} : memref<1x8x128xf32, #tpu.memory_space<vmem>>, vector<1x8x128xf32>,
    return
  }
  func.func @transform_0(%arg0: i32) -> (i32, i32) {
    %c0_i32 = arith.constant 0 : i32
    %c0_i32_0 = arith.constant 0 : i32
    return %arg0, %c0_i32 : i32, i32
  }
  func.func @transform_1(%arg0: i32) -> (i32, i32) {
    %c0_i32 = arith.constant 0 : i32
    %c0_i32_0 = arith.constant 0 : i32
    %c0_i32_1 = arith.constant 0 : i32
    return %c0_i32, %c0_i32_0 : i32, i32
  }
  func.func @transform_2(%arg0: i32) -> (i32, i32) {
    %c0_i32 = arith.constant 0 : i32
    %c0_i32_0 = arith.constant 0 : i32
    return %arg0, %c0_i32 : i32, i32
  }
  func.func @transform_3(%arg0: i32) -> (i32, i32, i32) {
    %c0_i32 = arith.constant 0 : i32
    %c0_i32_0 = arith.constant 0 : i32
    %c0_i32_1 = arith.constant 0 : i32
    return %arg0, %c0_i32, %c0_i32_0 : i32, i32, i32
  }
}

module attributes {stable_mosaic.version = 11 : i64} {
  func.func @_scale_shift_relu_kernel(%arg0: i32, %arg1: memref<128x128xf32, #tpu.memory_space<vmem>>, %arg2: memref<1x128xf32, #tpu.memory_space<vmem>>, %arg3: memref<1x128xf32, #tpu.memory_space<vmem>>, %arg4: memref<128x128xbf16, #tpu.memory_space<vmem>>) attributes {dimension_semantics = [#tpu.dimension_semantics<parallel>], iteration_bounds = array<i64: 2>, scalar_prefetch = 0 : i64, scratch_operands = 0 : i64, tpu.core_type = #tpu.core_type<tc>, window_params = [{transform_indices = @transform_0, window_bounds = array<i64: 128, 128>}, {pipeline_mode = #tpu.pipeline_mode<synchronous>, transform_indices = @transform_1, window_bounds = array<i64: 1, 128>}, {pipeline_mode = #tpu.pipeline_mode<synchronous>, transform_indices = @transform_2, window_bounds = array<i64: 1, 128>}, {transform_indices = @transform_3, window_bounds = array<i64: 128, 128>}]} {
    %c0 = arith.constant 0 : index
    %c0_0 = arith.constant 0 : index
    %0 = vector.load %arg1[%c0, %c0_0] : memref<128x128xf32, #tpu.memory_space<vmem>>, vector<128x128xf32>
    %c0_1 = arith.constant 0 : index
    %c0_2 = arith.constant 0 : index
    %1 = vector.load %arg2[%c0_1, %c0_2] : memref<1x128xf32, #tpu.memory_space<vmem>>, vector<1x128xf32>
    %2 = vector.broadcast %1 : vector<1x128xf32> to vector<128x128xf32>
    %3 = arith.mulf %0, %2 : vector<128x128xf32>
    %c0_3 = arith.constant 0 : index
    %c0_4 = arith.constant 0 : index
    %4 = vector.load %arg3[%c0_3, %c0_4] : memref<1x128xf32, #tpu.memory_space<vmem>>, vector<1x128xf32>
    %5 = vector.broadcast %4 : vector<1x128xf32> to vector<128x128xf32>
    %6 = arith.addf %3, %5 : vector<128x128xf32>
    %cst = arith.constant 0.000000e+00 : f32
    %7 = vector.broadcast %cst : f32 to vector<128x128xf32>
    %8 = arith.maximumf %6, %7 : vector<128x128xf32>
    %9 = arith.truncf %8 : vector<128x128xf32> to vector<128x128xbf16>
    %c0_5 = arith.constant 0 : index
    %c0_6 = arith.constant 0 : index
    %10 = vector.load %arg4[%c0_5, %c0_6] : memref<128x128xbf16, #tpu.memory_space<vmem>>, vector<128x128xbf16>
    tpu.vector_store %arg4[%c0_5, %c0_6], %9 {strides = array<i32>} : memref<128x128xbf16, #tpu.memory_space<vmem>>, vector<128x128xbf16>,
    return
  }
  func.func @transform_0(%arg0: i32) -> (i32, i32) {
    %c0_i32 = arith.constant 0 : i32
    %c0_i32_0 = arith.constant 0 : i32
    return %arg0, %c0_i32 : i32, i32
  }
  func.func @transform_1(%arg0: i32) -> (i32, i32) {
    %c0_i32 = arith.constant 0 : i32
    %c0_i32_0 = arith.constant 0 : i32
    %c0_i32_1 = arith.constant 0 : i32
    return %c0_i32, %c0_i32_0 : i32, i32
  }
  func.func @transform_2(%arg0: i32) -> (i32, i32) {
    %c0_i32 = arith.constant 0 : i32
    %c0_i32_0 = arith.constant 0 : i32
    %c0_i32_1 = arith.constant 0 : i32
    return %c0_i32, %c0_i32_0 : i32, i32
  }
  func.func @transform_3(%arg0: i32) -> (i32, i32) {
    %c0_i32 = arith.constant 0 : i32
    %c0_i32_0 = arith.constant 0 : i32
    return %arg0, %c0_i32 : i32, i32
  }
}

module attributes {stable_mosaic.version = 11 : i64} {
  func.func @_mm_stats_kernel(%arg0: i32, %arg1: memref<128x640xbf16, #tpu.memory_space<vmem>>, %arg2: memref<640x128xbf16, #tpu.memory_space<vmem>>, %arg3: memref<128x128xf32, #tpu.memory_space<vmem>>, %arg4: memref<1x8x128xf32, #tpu.memory_space<vmem>>) attributes {dimension_semantics = [#tpu.dimension_semantics<parallel>], iteration_bounds = array<i64: 2>, scalar_prefetch = 0 : i64, scratch_operands = 0 : i64, tpu.core_type = #tpu.core_type<tc>, window_params = [{transform_indices = @transform_0, window_bounds = array<i64: 128, 640>}, {pipeline_mode = #tpu.pipeline_mode<synchronous>, transform_indices = @transform_1, window_bounds = array<i64: 640, 128>}, {transform_indices = @transform_2, window_bounds = array<i64: 128, 128>}, {transform_indices = @transform_3, window_bounds = array<i64: 1, 8, 128>}]} {
    %c0 = arith.constant 0 : index
    %c0_0 = arith.constant 0 : index
    %0 = vector.load %arg1[%c0, %c0_0] : memref<128x640xbf16, #tpu.memory_space<vmem>>, vector<128x640xbf16>
    %c0_1 = arith.constant 0 : index
    %c0_2 = arith.constant 0 : index
    %1 = vector.load %arg2[%c0_1, %c0_2] : memref<640x128xbf16, #tpu.memory_space<vmem>>, vector<640x128xbf16>
    %cst = arith.constant dense<0.000000e+00> : vector<128x128xf32>
    %2 = tpu.matmul %0, %1, %cst {dimension_numbers = #tpu.dot_dimension_numbers<[1], [0], [0], [1], [0, 0, 1, 1], [], []>} : vector<128x640xbf16>, vector<640x128xbf16>, vector<128x128xf32> -> vector<128x128xf32>
    %c0_3 = arith.constant 0 : index
    %c0_4 = arith.constant 0 : index
    %3 = vector.load %arg3[%c0_3, %c0_4] : memref<128x128xf32, #tpu.memory_space<vmem>>, vector<128x128xf32>
    tpu.vector_store %arg3[%c0_3, %c0_4], %2 {strides = array<i32>} : memref<128x128xf32, #tpu.memory_space<vmem>>, vector<128x128xf32>,
    %cst_5 = arith.constant dense<0.000000e+00> : vector<128xf32>
    %4 = vector.multi_reduction <add>, %2, %cst_5 [0] : vector<128x128xf32> to vector<128xf32>
    %5 = vector.shape_cast %4 : vector<128xf32> to vector<1x128xf32>
    %6 = arith.mulf %2, %2 : vector<128x128xf32>
    %cst_6 = arith.constant dense<0.000000e+00> : vector<128xf32>
    %7 = vector.multi_reduction <add>, %6, %cst_6 [0] : vector<128x128xf32> to vector<128xf32>
    %8 = vector.shape_cast %7 : vector<128xf32> to vector<1x128xf32>
    %cst_7 = arith.constant 0.000000e+00 : f32
    %9 = vector.broadcast %cst_7 : f32 to vector<6x128xf32>
    %10 = tpu.concatenate %5, %8, %9 in 0 : vector<1x128xf32>, vector<1x128xf32>, vector<6x128xf32> -> vector<8x128xf32>
    %11 = vector.shape_cast %10 : vector<8x128xf32> to vector<1x8x128xf32>
    %c0_8 = arith.constant 0 : index
    %c0_9 = arith.constant 0 : index
    %c0_10 = arith.constant 0 : index
    %12 = vector.load %arg4[%c0_8, %c0_9, %c0_10] : memref<1x8x128xf32, #tpu.memory_space<vmem>>, vector<1x8x128xf32>
    tpu.vector_store %arg4[%c0_8, %c0_9, %c0_10], %11 {strides = array<i32>} : memref<1x8x128xf32, #tpu.memory_space<vmem>>, vector<1x8x128xf32>,
    return
  }
  func.func @transform_0(%arg0: i32) -> (i32, i32) {
    %c0_i32 = arith.constant 0 : i32
    %c0_i32_0 = arith.constant 0 : i32
    return %arg0, %c0_i32 : i32, i32
  }
  func.func @transform_1(%arg0: i32) -> (i32, i32) {
    %c0_i32 = arith.constant 0 : i32
    %c0_i32_0 = arith.constant 0 : i32
    %c0_i32_1 = arith.constant 0 : i32
    return %c0_i32, %c0_i32_0 : i32, i32
  }
  func.func @transform_2(%arg0: i32) -> (i32, i32) {
    %c0_i32 = arith.constant 0 : i32
    %c0_i32_0 = arith.constant 0 : i32
    return %arg0, %c0_i32 : i32, i32
  }
  func.func @transform_3(%arg0: i32) -> (i32, i32, i32) {
    %c0_i32 = arith.constant 0 : i32
    %c0_i32_0 = arith.constant 0 : i32
    %c0_i32_1 = arith.constant 0 : i32
    return %arg0, %c0_i32, %c0_i32_0 : i32, i32, i32
  }
}

module attributes {stable_mosaic.version = 11 : i64} {
  func.func @_mm_bias_kernel(%arg0: i32, %arg1: memref<128x384xbf16, #tpu.memory_space<vmem>>, %arg2: memref<384x128xbf16, #tpu.memory_space<vmem>>, %arg3: memref<1x128xf32, #tpu.memory_space<vmem>>, %arg4: memref<128x128xf32, #tpu.memory_space<vmem>>) attributes {dimension_semantics = [#tpu.dimension_semantics<parallel>], iteration_bounds = array<i64: 2>, scalar_prefetch = 0 : i64, scratch_operands = 0 : i64, tpu.core_type = #tpu.core_type<tc>, window_params = [{transform_indices = @transform_0, window_bounds = array<i64: 128, 384>}, {pipeline_mode = #tpu.pipeline_mode<synchronous>, transform_indices = @transform_1, window_bounds = array<i64: 384, 128>}, {pipeline_mode = #tpu.pipeline_mode<synchronous>, transform_indices = @transform_2, window_bounds = array<i64: 1, 128>}, {transform_indices = @transform_3, window_bounds = array<i64: 128, 128>}]} {
    %c0 = arith.constant 0 : index
    %c0_0 = arith.constant 0 : index
    %0 = vector.load %arg1[%c0, %c0_0] : memref<128x384xbf16, #tpu.memory_space<vmem>>, vector<128x384xbf16>
    %c0_1 = arith.constant 0 : index
    %c0_2 = arith.constant 0 : index
    %1 = vector.load %arg2[%c0_1, %c0_2] : memref<384x128xbf16, #tpu.memory_space<vmem>>, vector<384x128xbf16>
    %cst = arith.constant dense<0.000000e+00> : vector<128x128xf32>
    %2 = tpu.matmul %0, %1, %cst {dimension_numbers = #tpu.dot_dimension_numbers<[1], [0], [0], [1], [0, 0, 1, 1], [], []>} : vector<128x384xbf16>, vector<384x128xbf16>, vector<128x128xf32> -> vector<128x128xf32>
    %c0_3 = arith.constant 0 : index
    %c0_4 = arith.constant 0 : index
    %3 = vector.load %arg3[%c0_3, %c0_4] : memref<1x128xf32, #tpu.memory_space<vmem>>, vector<1x128xf32>
    %4 = vector.broadcast %3 : vector<1x128xf32> to vector<128x128xf32>
    %5 = arith.addf %2, %4 : vector<128x128xf32>
    %c0_5 = arith.constant 0 : index
    %c0_6 = arith.constant 0 : index
    %6 = vector.load %arg4[%c0_5, %c0_6] : memref<128x128xf32, #tpu.memory_space<vmem>>, vector<128x128xf32>
    tpu.vector_store %arg4[%c0_5, %c0_6], %5 {strides = array<i32>} : memref<128x128xf32, #tpu.memory_space<vmem>>, vector<128x128xf32>,
    return
  }
  func.func @transform_0(%arg0: i32) -> (i32, i32) {
    %c0_i32 = arith.constant 0 : i32
    %c0_i32_0 = arith.constant 0 : i32
    return %arg0, %c0_i32 : i32, i32
  }
  func.func @transform_1(%arg0: i32) -> (i32, i32) {
    %c0_i32 = arith.constant 0 : i32
    %c0_i32_0 = arith.constant 0 : i32
    %c0_i32_1 = arith.constant 0 : i32
    return %c0_i32, %c0_i32_0 : i32, i32
  }
  func.func @transform_2(%arg0: i32) -> (i32, i32) {
    %c0_i32 = arith.constant 0 : i32
    %c0_i32_0 = arith.constant 0 : i32
    %c0_i32_1 = arith.constant 0 : i32
    return %c0_i32, %c0_i32_0 : i32, i32
  }
  func.func @transform_3(%arg0: i32) -> (i32, i32) {
    %c0_i32 = arith.constant 0 : i32
    %c0_i32_0 = arith.constant 0 : i32
    return %arg0, %c0_i32 : i32, i32
  }
}

</mosaic_0001>

<llo_original>
// kernel: cnn_onset_forward.6
$region0: #{cnn_onset_forward.6}
  #allocation0 [shape = 'u32[]', space=smem, size = 0x4, offset = 0x4, fixed_abs, tag = 'smem constant byte address 0x4 - core index']
  #allocation1 [shape = 'u32[144,128]{1,0:T(1,128)}', space=vmem, size = 0x12000, scoped, tag = 'internal scratch']
  %s0 = inlined_call_operand.vmem [shape: f32[256,128], index: 0, kind: input, shape index: {}]
  %s1 = inlined_call_operand.vmem [shape: f32[1,128], index: 1, kind: input, shape index: {}]
  %s2 = inlined_call_operand.vmem [shape: f32[1,128], index: 2, kind: input, shape index: {}]
  %s3 = inlined_call_operand.vmem [shape: bf16[256,128], index: 3, kind: output, shape index: {}]
  %s4 = sld [smem:[#allocation0]]
  $region45: #{cnn_onset_forward.6} parent=0
    _
  %s6 = ssub.s32 1, %s4
  %s7 = scalar_select 0, %s6, %s4
  loop: start=0, step=1, limit=4
  $region2: #{cnn_onset_forward.6} parent=0 // loop_pre_header
    _
  $region3: #{cnn_onset_forward.6} parent=0 // loop_header
    %s9 = sphi 0, %s13
    %p10 = scmp.ge.s32.totalorder %s9, 4
    %s19 = sphi 0, %s21
    %s22 = sphi 0, %s19
    %s23 = sphi 0, %s22
    %s39 = sphi 0, %s23
    %s43 = sphi 0, %s43
    %s45 = sphi 0, %s43
    %s46 = sphi 0, %s45
    %s60 = sphi 0, %s46
    %s64 = sphi 0, %s64
    %s66 = sphi 0, %s64
    %s67 = sphi 0, %s66
    %s81 = sphi 0, %s67
    %s87 = sphi 0, %s89
    %s90 = sphi 0, %s87
    %s91 = sphi 0, %s90
    %s107 = sphi 0, %s91
  $region4: #{cnn_onset_forward.6} parent=0 // loop_header_branch
    %12 = sbr.rel (%p10) target = $region8
  $region5: #{cnn_onset_forward.6} parent=0 // loop_body
    %s14 = ssub.s32 %s9, 1
    %s15 = ssub.s32 %s9, 2
    %s16 = sadd.s32 %s9, 1
    %s17 = ssub.s32 %s9, %s16
    %p18 = scmp.eq.s32.totalorder %s17, 0
    %s20 = sadd.s32 %s19, 1
    %s21 = scalar_select %p18, %s19, %s20
    %p24 = pneg %p18
    %p25 = scmp.eq.s32.totalorder %s9, 1
    %p26 = por %p24, %p25
    %p27 = scmp.ne.s32.totalorder %s19, %s22
    %p28 = scmp.eq.s32.totalorder %s9, 0
    %p29 = por %p27, %p28
    %p30 = scmp.ne.s32.totalorder %s19, %s22
    %p31 = scmp.eq.s32.totalorder %s14, 1
    %p32 = por %p30, %p31
    %p33 = scmp.ne.s32.totalorder %s22, %s23
    %p34 = scmp.eq.s32.totalorder %s14, 0
    %p35 = por %p33, %p34
    %p36 = scmp.ne.s32.totalorder %s22, %s23
    %p37 = scmp.eq.s32.totalorder %s15, 1
    %p38 = por %p36, %p37
    %p40 = scmp.ne.s32.totalorder %s23, %s39
    %p41 = scmp.eq.s32.totalorder %s15, 0
    %p42 = por %p40, %p41
    %s44 = sadd.s32 %s43, 1
    %p47 = scmp.eq.s32.totalorder %s9, 1
    %p48 = scmp.ne.s32.totalorder %s43, %s45
    %p49 = scmp.eq.s32.totalorder %s9, 0
    %p50 = por %p48, %p49
    %p51 = scmp.ne.s32.totalorder %s43, %s45
    %p52 = scmp.eq.s32.totalorder %s14, 1
    %p53 = por %p51, %p52
    %p54 = scmp.ne.s32.totalorder %s45, %s46
    %p55 = scmp.eq.s32.totalorder %s14, 0
    %p56 = por %p54, %p55
    %p57 = scmp.ne.s32.totalorder %s45, %s46
    %p58 = scmp.eq.s32.totalorder %s15, 1
    %p59 = por %p57, %p58
    %p61 = scmp.ne.s32.totalorder %s46, %s60
    %p62 = scmp.eq.s32.totalorder %s15, 0
    %p63 = por %p61, %p62
    %s65 = sadd.s32 %s64, 1
    %p68 = scmp.eq.s32.totalorder %s9, 1
    %p69 = scmp.ne.s32.totalorder %s64, %s66
    %p70 = scmp.eq.s32.totalorder %s9, 0
    %p71 = por %p69, %p70
    %p72 = scmp.ne.s32.totalorder %s64, %s66
    %p73 = scmp.eq.s32.totalorder %s14, 1
    %p74 = por %p72, %p73
    %p75 = scmp.ne.s32.totalorder %s66, %s67
    %p76 = scmp.eq.s32.totalorder %s14, 0
    %p77 = por %p75, %p76
    %p78 = scmp.ne.s32.totalorder %s66, %s67
    %p79 = scmp.eq.s32.totalorder %s15, 1
    %p80 = por %p78, %p79
    %p82 = scmp.ne.s32.totalorder %s67, %s81
    %p83 = scmp.eq.s32.totalorder %s15, 0
    %p84 = por %p82, %p83
    %s85 = ssub.s32 %s9, %s16
    %p86 = scmp.eq.s32.totalorder %s85, 0
    %s88 = sadd.s32 %s87, 1
    %s89 = scalar_select %p86, %s87, %s88
    %p92 = pneg %p86
    %p93 = scmp.eq.s32.totalorder %s9, 1
    %p94 = por %p92, %p93
    %p95 = scmp.ne.s32.totalorder %s87, %s90
    %p96 = scmp.eq.s32.totalorder %s9, 0
    %p97 = por %p95, %p96
    %p98 = scmp.ne.s32.totalorder %s87, %s90
    %p99 = scmp.eq.s32.totalorder %s14, 1
    %p100 = por %p98, %p99
    %p101 = scmp.ne.s32.totalorder %s90, %s91
    %p102 = scmp.eq.s32.totalorder %s14, 0
    %p103 = por %p101, %p102
    %p104 = scmp.ne.s32.totalorder %s90, %s91
    %p105 = scmp.eq.s32.totalorder %s15, 1
    %p106 = por %p104, %p105
    %p108 = scmp.ne.s32.totalorder %s91, %s107
    %p109 = scmp.eq.s32.totalorder %s15, 0
    %p110 = por %p108, %p109
    %p111 = scmp.le.s32.totalorder 1, %s9
    %p112 = scmp.lt.s32.totalorder %s9, 3
    %p113 = pnand %p111, %p112
    %p114 = pneg %p113
    // Predicated region
    $region9: #{cnn_onset_forward.6} parent=5 // pred_check
      _
    $region10: #{cnn_onset_forward.6} parent=5 // pred_check_branch
      %116 = sbr.rel (%p113) target = $region12
    $region11: #{cnn_onset_forward.6} parent=5 // pred_region
      %s117 = ssub.s32 %s9, 1
      // Predicated region
      $region13: #{cnn_onset_forward.6} parent=11 // pred_check
        %p118 = pneg %p56
      $region14: #{cnn_onset_forward.6} parent=11 // pred_check_branch
        %120 = sbr.rel (%p118) target = $region16
      $region15: #{cnn_onset_forward.6} parent=11 // pred_region
        _
      $region16: #{cnn_onset_forward.6} parent=11 // pred_fallthru
        _
      // Predicated region
      $region17: #{cnn_onset_forward.6} parent=11 // pred_check
        %p121 = pneg %p77
      $region18: #{cnn_onset_forward.6} parent=11 // pred_check_branch
        %123 = sbr.rel (%p121) target = $region20
      $region19: #{cnn_onset_forward.6} parent=11 // pred_region
        _
      $region20: #{cnn_onset_forward.6} parent=11 // pred_fallthru
        _
    $region12: #{cnn_onset_forward.6} parent=5 // pred_fallthru
      _
    %p124 = scmp.lt.s32.totalorder %s9, 2
    // Predicated region
    $region21: #{cnn_onset_forward.6} parent=5 // pred_check
      %p125 = pneg %p124
    $region22: #{cnn_onset_forward.6} parent=5 // pred_check_branch
      %127 = sbr.rel (%p125) target = $region24
    $region23: #{cnn_onset_forward.6} parent=5 // pred_region
      // Predicated region
      $region25: #{cnn_onset_forward.6} parent=23 // pred_check
        %p128 = pneg %p29
      $region26: #{cnn_onset_forward.6} parent=23 // pred_check_branch
        %130 = sbr.rel (%p128) target = $region28
      $region27: #{cnn_onset_forward.6} parent=23 // pred_region
        %s131 = smul.u32 16, %s9
        %p132 = scmp.lt.s32.totalorder %s131, 31
        %s133 = scalar_select %p132, %s131, 31
        %s134 = smul.addr %s133, 8
        %s135 = scalar_lea.vmem %s0, %s134
        %s136 = smul.u32 16, %s9
      $region28: #{cnn_onset_forward.6} parent=23 // pred_fallthru
        _
    $region24: #{cnn_onset_forward.6} parent=5 // pred_fallthru
      _
    %p137 = scmp.le.s32.totalorder 1, %s9
    %p138 = scmp.lt.s32.totalorder %s9, 3
    %p139 = pnand %p137, %p138
    %p140 = pneg %p139
    // Predicated region
    $region29: #{cnn_onset_forward.6} parent=5 // pred_check
      _
    $region30: #{cnn_onset_forward.6} parent=5 // pred_check_branch
      %142 = sbr.rel (%p139) target = $region32
    $region31: #{cnn_onset_forward.6} parent=5 // pred_region
      %s143 = ssub.s32 %s9, 1
      %s144 = smul.u32 16, %s14
      %p145 = scmp.lt.s32.totalorder %s144, 31
      %s146 = scalar_select %p145, %s144, 31
      %s147 = smul.addr %s146, 8
      %s148 = scalar_lea.vmem %s0, %s147
      %p149 = pneg %p35
      %p150 = pneg %p32
      %p151 = pneg %p56
      %p152 = pneg %p53
      %p153 = pneg %p77
      %p154 = pneg %p74
      %p155 = pneg %p103
      %p156 = pneg %p100
      %s157 = smul.u32 16, %s14
      %p158 = scmp.lt.s32.totalorder %s157, 31
      %s159 = scalar_select %p158, %s157, 31
      %s160 = smul.addr %s159, 4
      %s161 = scalar_lea.vmem %s3, %s160
      %s162 = smul.u32 16, %s14
      %p163 = scmp.lt.s32.totalorder %s162, 31
      %s164 = scalar_select %p163, %s162, 31
      %s165 = smul.addr %s164, 8
      %s166 = scalar_lea.vmem %s0, %s165
      %s167 = smul.u32 16, %s14
      %s168 = smul.u32 16, %s14
      %p169 = scmp.lt.s32.totalorder %s168, 31
      %s170 = scalar_select %p169, %s168, 31
      %s171 = smul.addr %s170, 4
      %s172 = scalar_lea.vmem %s3, %s171
      %s173 = smul.u32 16, %s14
      %v174 = vld [vmem:[%s166] sm:$0xff]
      %v175 = vld [vmem:[%s166 + $0x8] sm:$0xff]
      %v176 = vld [vmem:[%s166 + $0x10] sm:$0xff]
      %v177 = vld [vmem:[%s166 + $0x18] sm:$0xff]
      %v178 = vld [vmem:[%s166 + $0x20] sm:$0xff]
      %v179 = vld [vmem:[%s166 + $0x28] sm:$0xff]
      %v180 = vld [vmem:[%s166 + $0x30] sm:$0xff]
      %v181 = vld [vmem:[%s166 + $0x38] sm:$0xff]
      %v182 = vld [vmem:[%s166 + $0x40] sm:$0xff]
      %v183 = vld [vmem:[%s166 + $0x48] sm:$0xff]
      %v184 = vld [vmem:[%s166 + $0x50] sm:$0xff]
      %v185 = vld [vmem:[%s166 + $0x58] sm:$0xff]
      %v186 = vld [vmem:[%s166 + $0x60] sm:$0xff]
      %v187 = vld [vmem:[%s166 + $0x68] sm:$0xff]
      %v188 = vld [vmem:[%s166 + $0x70] sm:$0xff]
      %v189 = vld [vmem:[%s166 + $0x78] sm:$0xff]
      %v190 = vld [vmem:[%s1] sm:$0x1]
      %v192 = vlaneseq
      %v193 = vshrl.u32 %v192, 7
      %v194 = vsub.s32 0, %v193
      %v195 = vrot.slane %v190, %v194
      %v197 = vmul.f32 %v174, %v195
      %v198 = vmul.f32 %v175, %v195
      %v199 = vmul.f32 %v176, %v195
      %v200 = vmul.f32 %v177, %v195
      %v201 = vmul.f32 %v178, %v195
      %v202 = vmul.f32 %v179, %v195
      %v203 = vmul.f32 %v180, %v195
      %v204 = vmul.f32 %v181, %v195
      %v205 = vmul.f32 %v182, %v195
      %v206 = vmul.f32 %v183, %v195
      %v207 = vmul.f32 %v184, %v195
      %v208 = vmul.f32 %v185, %v195
      %v209 = vmul.f32 %v186, %v195
      %v210 = vmul.f32 %v187, %v195
      %v211 = vmul.f32 %v188, %v195
      %v212 = vmul.f32 %v189, %v195
      %v213 = vld [vmem:[%s2] sm:$0x1]
      %v215 = vlaneseq
      %v216 = vshrl.u32 %v215, 7
      %v217 = vsub.s32 0, %v216
      %v218 = vrot.slane %v213, %v217
      %v220 = vadd.f32 %v197, %v218
      %v221 = vadd.f32 %v198, %v218
      %v222 = vadd.f32 %v199, %v218
      %v223 = vadd.f32 %v200, %v218
      %v224 = vadd.f32 %v201, %v218
      %v225 = vadd.f32 %v202, %v218
      %v226 = vadd.f32 %v203, %v218
      %v227 = vadd.f32 %v204, %v218
      %v228 = vadd.f32 %v205, %v218
      %v229 = vadd.f32 %v206, %v218
      %v230 = vadd.f32 %v207, %v218
      %v231 = vadd.f32 %v208, %v218
      %v232 = vadd.f32 %v209, %v218
      %v233 = vadd.f32 %v210, %v218
      %v234 = vadd.f32 %v211, %v218
      %v235 = vadd.f32 %v212, %v218
      %v236 = vmax.f32 %v220, 0.0
      %v237 = vmax.f32 %v221, 0.0
      %v238 = vmax.f32 %v222, 0.0
      %v239 = vmax.f32 %v223, 0.0
      %v240 = vmax.f32 %v224, 0.0
      %v241 = vmax.f32 %v225, 0.0
      %v242 = vmax.f32 %v226, 0.0
      %v243 = vmax.f32 %v227, 0.0
      %v244 = vmax.f32 %v228, 0.0
      %v245 = vmax.f32 %v229, 0.0
      %v246 = vmax.f32 %v230, 0.0
      %v247 = vmax.f32 %v231, 0.0
      %v248 = vmax.f32 %v232, 0.0
      %v249 = vmax.f32 %v233, 0.0
      %v250 = vmax.f32 %v234, 0.0
      %v251 = vmax.f32 %v235, 0.0
      %v252 = vpack.c.bf16 %v237, %v236
      %v253 = vpack.c.bf16 %v239, %v238
      %v254 = vpack.c.bf16 %v241, %v240
      %v255 = vpack.c.bf16 %v243, %v242
      %v256 = vpack.c.bf16 %v245, %v244
      %v257 = vpack.c.bf16 %v247, %v246
      %v258 = vpack.c.bf16 %v249, %v248
      %v259 = vpack.c.bf16 %v251, %v250
      %v268 = vunpack.c.l.b16 %v252
      %v269 = vunpack.c.h.b16 %v252
      %v270 = vunpack.c.l.b16 %v253
      %v271 = vunpack.c.h.b16 %v253
      %v272 = vunpack.c.l.b16 %v254
      %v273 = vunpack.c.h.b16 %v254
      %v274 = vunpack.c.l.b16 %v255
      %v275 = vunpack.c.h.b16 %v255
      %v276 = vunpack.c.l.b16 %v256
      %v277 = vunpack.c.h.b16 %v256
      %v278 = vunpack.c.l.b16 %v257
      %v279 = vunpack.c.h.b16 %v257
      %v280 = vunpack.c.l.b16 %v258
      %v281 = vunpack.c.h.b16 %v258
      %v282 = vunpack.c.l.b16 %v259
      %v283 = vunpack.c.h.b16 %v259
      %v284 = vpack.c.b16 %v268, %v268
      %v285 = vpack.c.b16 %v269, %v269
      %v286 = vpack.c.b16 %v270, %v270
      %v287 = vpack.c.b16 %v271, %v271
      %v288 = vpack.c.b16 %v272, %v272
      %v289 = vpack.c.b16 %v273, %v273
      %v290 = vpack.c.b16 %v274, %v274
      %v291 = vpack.c.b16 %v275, %v275
      %v292 = vpack.c.b16 %v276, %v276
      %v293 = vpack.c.b16 %v277, %v277
      %v294 = vpack.c.b16 %v278, %v278
      %v295 = vpack.c.b16 %v279, %v279
      %v296 = vpack.c.b16 %v280, %v280
      %v297 = vpack.c.b16 %v281, %v281
      %v298 = vpack.c.b16 %v282, %v282
      %v299 = vpack.c.b16 %v283, %v283
      %316 = vst [vmem:[%s172] sm:$0xf] %v284
      %317 = vst [vmem:[%s172 + $0x4] sm:$0xf] %v285
      %318 = vst [vmem:[%s172 + $0x8] sm:$0xf] %v286
      %319 = vst [vmem:[%s172 + $0xc] sm:$0xf] %v287
      %320 = vst [vmem:[%s172 + $0x10] sm:$0xf] %v288
      %321 = vst [vmem:[%s172 + $0x14] sm:$0xf] %v289
      %322 = vst [vmem:[%s172 + $0x18] sm:$0xf] %v290
      %323 = vst [vmem:[%s172 + $0x1c] sm:$0xf] %v291
      %324 = vst [vmem:[%s172 + $0x20] sm:$0xf] %v292
      %325 = vst [vmem:[%s172 + $0x24] sm:$0xf] %v293
      %326 = vst [vmem:[%s172 + $0x28] sm:$0xf] %v294
      %327 = vst [vmem:[%s172 + $0x2c] sm:$0xf] %v295
      %328 = vst [vmem:[%s172 + $0x30] sm:$0xf] %v296
      %329 = vst [vmem:[%s172 + $0x34] sm:$0xf] %v297
      %330 = vst [vmem:[%s172 + $0x38] sm:$0xf] %v298
      %331 = vst [vmem:[%s172 + $0x3c] sm:$0xf] %v299
      %s332 = smul.u32 16, %s14
      %p333 = scmp.lt.s32.totalorder %s332, 31
      %s334 = scalar_select %p333, %s332, 31
      %s335 = smul.addr %s334, 4
      %s336 = scalar_lea.vmem %s3, %s335
      // Predicated region
      $region33: #{cnn_onset_forward.6} parent=31 // pred_check
        %p337 = pneg %p100
      $region34: #{cnn_onset_forward.6} parent=31 // pred_check_branch
        %339 = sbr.rel (%p337) target = $region36
      $region35: #{cnn_onset_forward.6} parent=31 // pred_region
        %s340 = smul.u32 16, %s14
      $region36: #{cnn_onset_forward.6} parent=31 // pred_fallthru
        _
    $region32: #{cnn_onset_forward.6} parent=5 // pred_fallthru
      _
    %p341 = scmp.le.s32.totalorder 2, %s9
    // Predicated region
    $region37: #{cnn_onset_forward.6} parent=5 // pred_check
      %p342 = pneg %p341
    $region38: #{cnn_onset_forward.6} parent=5 // pred_check_branch
      %344 = sbr.rel (%p342) target = $region40
    $region39: #{cnn_onset_forward.6} parent=5 // pred_region
      %s345 = ssub.s32 %s9, 2
      // Predicated region
      $region41: #{cnn_onset_forward.6} parent=39 // pred_check
        %p346 = pneg %p106
      $region42: #{cnn_onset_forward.6} parent=39 // pred_check_branch
        %348 = sbr.rel (%p346) target = $region44
      $region43: #{cnn_onset_forward.6} parent=39 // pred_region
        %s349 = smul.u32 16, %s15
        %p350 = scmp.lt.s32.totalorder %s349, 31
        %s351 = scalar_select %p350, %s349, 31
        %s352 = smul.addr %s351, 4
        %s353 = scalar_lea.vmem %s3, %s352
      $region44: #{cnn_onset_forward.6} parent=39 // pred_fallthru
        _
    $region40: #{cnn_onset_forward.6} parent=5 // pred_fallthru
      _
  $region6: #{cnn_onset_forward.6} parent=0 // loop_footer
    %s13 = sadd.s32 1, %s9
  $region7: #{cnn_onset_forward.6} parent=0 // loop_footer_branch
    %8 = sbr.rel target = $region3
  $region8: #{cnn_onset_forward.6} parent=0 // loop_exit
    _

// kernel: cnn_onset_forward.5
$region0: #{cnn_onset_forward.5}
  #allocation0 [shape = 'u32[]', space=smem, size = 0x4, offset = 0x4, fixed_abs, tag = 'smem constant byte address 0x4 - core index']
  #allocation1 [shape = 'u32[144,128]{1,0:T(1,128)}', space=vmem, size = 0x12000, scoped, tag = 'internal scratch']
  %s0 = inlined_call_operand.vmem [shape: bf16[256,128], index: 0, kind: input, shape index: {}]
  %s1 = inlined_call_operand.vmem [shape: bf16[128,128], index: 1, kind: input, shape index: {}]
  %s2 = inlined_call_operand.vmem [shape: f32[256,128], index: 2, kind: output, shape index: {0}]
  %s3 = inlined_call_operand.vmem [shape: f32[2,8,128], index: 3, kind: output, shape index: {1}]
  %4 = xla_tuple %s2, %s3
  %s5 = sld [smem:[#allocation0]]
  $region49: #{cnn_onset_forward.5} parent=0
    _
  %s7 = ssub.s32 1, %s5
  %s8 = scalar_select 0, %s7, %s5
  loop: start=0, step=1, limit=4
  $region2: #{cnn_onset_forward.5} parent=0 // loop_pre_header
    _
  $region3: #{cnn_onset_forward.5} parent=0 // loop_header
    %s10 = sphi 0, %s14
    %p11 = scmp.ge.s32.totalorder %s10, 4
    %s20 = sphi 0, %s22
    %s23 = sphi 0, %s20
    %s24 = sphi 0, %s23
    %s40 = sphi 0, %s24
    %s44 = sphi 0, %s44
    %s46 = sphi 0, %s44
    %s47 = sphi 0, %s46
    %s61 = sphi 0, %s47
    %s67 = sphi 0, %s69
    %s70 = sphi 0, %s67
    %s71 = sphi 0, %s70
    %s87 = sphi 0, %s71
    %s93 = sphi 0, %s95
    %s96 = sphi 0, %s93
    %s97 = sphi 0, %s96
    %s113 = sphi 0, %s97
  $region4: #{cnn_onset_forward.5} parent=0 // loop_header_branch
    %13 = sbr.rel (%p11) target = $region8
  $region5: #{cnn_onset_forward.5} parent=0 // loop_body
    %s15 = ssub.s32 %s10, 1
    %s16 = ssub.s32 %s10, 2
    %s17 = sadd.s32 %s10, 1
    %s18 = ssub.s32 %s10, %s17
    %p19 = scmp.eq.s32.totalorder %s18, 0
    %s21 = sadd.s32 %s20, 1
    %s22 = scalar_select %p19, %s20, %s21
    %p25 = pneg %p19
    %p26 = scmp.eq.s32.totalorder %s10, 1
    %p27 = por %p25, %p26
    %p28 = scmp.ne.s32.totalorder %s20, %s23
    %p29 = scmp.eq.s32.totalorder %s10, 0
    %p30 = por %p28, %p29
    %p31 = scmp.ne.s32.totalorder %s20, %s23
    %p32 = scmp.eq.s32.totalorder %s15, 1
    %p33 = por %p31, %p32
    %p34 = scmp.ne.s32.totalorder %s23, %s24
    %p35 = scmp.eq.s32.totalorder %s15, 0
    %p36 = por %p34, %p35
    %p37 = scmp.ne.s32.totalorder %s23, %s24
    %p38 = scmp.eq.s32.totalorder %s16, 1
    %p39 = por %p37, %p38
    %p41 = scmp.ne.s32.totalorder %s24, %s40
    %p42 = scmp.eq.s32.totalorder %s16, 0
    %p43 = por %p41, %p42
    %s45 = sadd.s32 %s44, 1
    %p48 = scmp.eq.s32.totalorder %s10, 1
    %p49 = scmp.ne.s32.totalorder %s44, %s46
    %p50 = scmp.eq.s32.totalorder %s10, 0
    %p51 = por %p49, %p50
    %p52 = scmp.ne.s32.totalorder %s44, %s46
    %p53 = scmp.eq.s32.totalorder %s15, 1
    %p54 = por %p52, %p53
    %p55 = scmp.ne.s32.totalorder %s46, %s47
    %p56 = scmp.eq.s32.totalorder %s15, 0
    %p57 = por %p55, %p56
    %p58 = scmp.ne.s32.totalorder %s46, %s47
    %p59 = scmp.eq.s32.totalorder %s16, 1
    %p60 = por %p58, %p59
    %p62 = scmp.ne.s32.totalorder %s47, %s61
    %p63 = scmp.eq.s32.totalorder %s16, 0
    %p64 = por %p62, %p63
    %s65 = ssub.s32 %s10, %s17
    %p66 = scmp.eq.s32.totalorder %s65, 0
    %s68 = sadd.s32 %s67, 1
    %s69 = scalar_select %p66, %s67, %s68
    %p72 = pneg %p66
    %p73 = scmp.eq.s32.totalorder %s10, 1
    %p74 = por %p72, %p73
    %p75 = scmp.ne.s32.totalorder %s67, %s70
    %p76 = scmp.eq.s32.totalorder %s10, 0
    %p77 = por %p75, %p76
    %p78 = scmp.ne.s32.totalorder %s67, %s70
    %p79 = scmp.eq.s32.totalorder %s15, 1
    %p80 = por %p78, %p79
    %p81 = scmp.ne.s32.totalorder %s70, %s71
    %p82 = scmp.eq.s32.totalorder %s15, 0
    %p83 = por %p81, %p82
    %p84 = scmp.ne.s32.totalorder %s70, %s71
    %p85 = scmp.eq.s32.totalorder %s16, 1
    %p86 = por %p84, %p85
    %p88 = scmp.ne.s32.totalorder %s71, %s87
    %p89 = scmp.eq.s32.totalorder %s16, 0
    %p90 = por %p88, %p89
    %s91 = ssub.s32 %s10, %s17
    %p92 = scmp.eq.s32.totalorder %s91, 0
    %s94 = sadd.s32 %s93, 1
    %s95 = scalar_select %p92, %s93, %s94
    %p98 = pneg %p92
    %p99 = scmp.eq.s32.totalorder %s10, 1
    %p100 = por %p98, %p99
    %p101 = scmp.ne.s32.totalorder %s93, %s96
    %p102 = scmp.eq.s32.totalorder %s10, 0
    %p103 = por %p101, %p102
    %p104 = scmp.ne.s32.totalorder %s93, %s96
    %p105 = scmp.eq.s32.totalorder %s15, 1
    %p106 = por %p104, %p105
    %p107 = scmp.ne.s32.totalorder %s96, %s97
    %p108 = scmp.eq.s32.totalorder %s15, 0
    %p109 = por %p107, %p108
    %p110 = scmp.ne.s32.totalorder %s96, %s97
    %p111 = scmp.eq.s32.totalorder %s16, 1
    %p112 = por %p110, %p111
    %p114 = scmp.ne.s32.totalorder %s97, %s113
    %p115 = scmp.eq.s32.totalorder %s16, 0
    %p116 = por %p114, %p115
    %p117 = scmp.le.s32.totalorder 1, %s10
    %p118 = scmp.lt.s32.totalorder %s10, 3
    %p119 = pnand %p117, %p118
    %p120 = pneg %p119
    // Predicated region
    $region9: #{cnn_onset_forward.5} parent=5 // pred_check
      _
    $region10: #{cnn_onset_forward.5} parent=5 // pred_check_branch
      %122 = sbr.rel (%p119) target = $region12
    $region11: #{cnn_onset_forward.5} parent=5 // pred_region
      %s123 = ssub.s32 %s10, 1
      // Predicated region
      $region13: #{cnn_onset_forward.5} parent=11 // pred_check
        %p124 = pneg %p57
      $region14: #{cnn_onset_forward.5} parent=11 // pred_check_branch
        %126 = sbr.rel (%p124) target = $region16
      $region15: #{cnn_onset_forward.5} parent=11 // pred_region
        _
      $region16: #{cnn_onset_forward.5} parent=11 // pred_fallthru
        _
    $region12: #{cnn_onset_forward.5} parent=5 // pred_fallthru
      _
    %p127 = scmp.lt.s32.totalorder %s10, 2
    // Predicated region
    $region17: #{cnn_onset_forward.5} parent=5 // pred_check
      %p128 = pneg %p127
    $region18: #{cnn_onset_forward.5} parent=5 // pred_check_branch
      %130 = sbr.rel (%p128) target = $region20
    $region19: #{cnn_onset_forward.5} parent=5 // pred_region
      // Predicated region
      $region21: #{cnn_onset_forward.5} parent=19 // pred_check
        %p131 = pneg %p30
      $region22: #{cnn_onset_forward.5} parent=19 // pred_check_branch
        %133 = sbr.rel (%p131) target = $region24
      $region23: #{cnn_onset_forward.5} parent=19 // pred_region
        %s134 = smul.u32 16, %s10
        %p135 = scmp.lt.s32.totalorder %s134, 31
        %s136 = scalar_select %p135, %s134, 31
        %s137 = smul.addr %s136, 4
        %s138 = scalar_lea.vmem %s0, %s137
        %s139 = smul.u32 16, %s10
      $region24: #{cnn_onset_forward.5} parent=19 // pred_fallthru
        _
    $region20: #{cnn_onset_forward.5} parent=5 // pred_fallthru
      _
    %p140 = scmp.le.s32.totalorder 1, %s10
    %p141 = scmp.lt.s32.totalorder %s10, 3
    %p142 = pnand %p140, %p141
    %p143 = pneg %p142
    // Predicated region
    $region25: #{cnn_onset_forward.5} parent=5 // pred_check
      _
    $region26: #{cnn_onset_forward.5} parent=5 // pred_check_branch
      %145 = sbr.rel (%p142) target = $region28
    $region27: #{cnn_onset_forward.5} parent=5 // pred_region
      %s146 = ssub.s32 %s10, 1
      %s147 = smul.u32 16, %s15
      %p148 = scmp.lt.s32.totalorder %s147, 31
      %s149 = scalar_select %p148, %s147, 31
      %s150 = smul.addr %s149, 4
      %s151 = scalar_lea.vmem %s0, %s150
      %p152 = pneg %p36
      %p153 = pneg %p33
      %p154 = pneg %p57
      %p155 = pneg %p54
      %p156 = pneg %p83
      %p157 = pneg %p80
      %s158 = smul.u32 16, %s15
      %p159 = scmp.lt.s32.totalorder %s158, 31
      %s160 = scalar_select %p159, %s158, 31
      %s161 = smul.addr %s160, 8
      %s162 = scalar_lea.vmem %s2, %s161
      %p163 = pneg %p109
      %p164 = pneg %p106
      %p165 = scmp.lt.s32.totalorder %s15, 1
      %s166 = scalar_select %p165, %s15, 1
      %s167 = smul.addr %s166, 8
      %s168 = scalar_lea.vmem %s3, %s167
      %s169 = smul.u32 16, %s15
      %p170 = scmp.lt.s32.totalorder %s169, 31
      %s171 = scalar_select %p170, %s169, 31
      %s172 = smul.addr %s171, 4
      %s173 = scalar_lea.vmem %s0, %s172
      %s174 = smul.u32 16, %s15
      %s175 = smul.u32 16, %s15
      %p176 = scmp.lt.s32.totalorder %s175, 31
      %s177 = scalar_select %p176, %s175, 31
      %s178 = smul.addr %s177, 8
      %s179 = scalar_lea.vmem %s2, %s178
      %s180 = smul.u32 16, %s15
      %p181 = scmp.lt.s32.totalorder %s15, 1
      %s182 = scalar_select %p181, %s15, 1
      %s183 = smul.addr %s182, 8
      %s184 = scalar_lea.vmem %s3, %s183
      %v186 = vld [vmem:[%s173] sm:$0xf]
      %v187 = vld [vmem:[%s173 + $0x4] sm:$0xf]
      %v188 = vld [vmem:[%s173 + $0x8] sm:$0xf]
      %v189 = vld [vmem:[%s173 + $0xc] sm:$0xf]
      %v190 = vld [vmem:[%s173 + $0x10] sm:$0xf]
      %v191 = vld [vmem:[%s173 + $0x14] sm:$0xf]
      %v192 = vld [vmem:[%s173 + $0x18] sm:$0xf]
      %v193 = vld [vmem:[%s173 + $0x1c] sm:$0xf]
      %v194 = vld [vmem:[%s173 + $0x20] sm:$0xf]
      %v195 = vld [vmem:[%s173 + $0x24] sm:$0xf]
      %v196 = vld [vmem:[%s173 + $0x28] sm:$0xf]
      %v197 = vld [vmem:[%s173 + $0x2c] sm:$0xf]
      %v198 = vld [vmem:[%s173 + $0x30] sm:$0xf]
      %v199 = vld [vmem:[%s173 + $0x34] sm:$0xf]
      %v200 = vld [vmem:[%s173 + $0x38] sm:$0xf]
      %v201 = vld [vmem:[%s173 + $0x3c] sm:$0xf]
      %v202 = vld [vmem:[%s1] sm:$0xf]
      %v203 = vld [vmem:[%s1 + $0x4] sm:$0xf]
      %v204 = vld [vmem:[%s1 + $0x8] sm:$0xf]
      %v205 = vld [vmem:[%s1 + $0xc] sm:$0xf]
      %v206 = vld [vmem:[%s1 + $0x10] sm:$0xf]
      %v207 = vld [vmem:[%s1 + $0x14] sm:$0xf]
      %v208 = vld [vmem:[%s1 + $0x18] sm:$0xf]
      %v209 = vld [vmem:[%s1 + $0x1c] sm:$0xf]
      %v210 = vld [vmem:[%s1 + $0x20] sm:$0xf]
      %v211 = vld [vmem:[%s1 + $0x24] sm:$0xf]
      %v212 = vld [vmem:[%s1 + $0x28] sm:$0xf]
      %v213 = vld [vmem:[%s1 + $0x2c] sm:$0xf]
      %v214 = vld [vmem:[%s1 + $0x30] sm:$0xf]
      %v215 = vld [vmem:[%s1 + $0x34] sm:$0xf]
      %v216 = vld [vmem:[%s1 + $0x38] sm:$0xf]
      %v217 = vld [vmem:[%s1 + $0x3c] sm:$0xf]
      %v234 = vunpack.c.l.b16 %v186
      %v235 = vunpack.c.l.b16 %v187
      %v236 = vunpack.c.l.b16 %v188
      %v237 = vunpack.c.l.b16 %v189
      %v238 = vunpack.c.l.b16 %v190
      %v239 = vunpack.c.l.b16 %v191
      %v240 = vunpack.c.l.b16 %v192
      %v241 = vunpack.c.l.b16 %v193
      %v242 = vunpack.c.l.b16 %v194
      %v243 = vunpack.c.l.b16 %v195
      %v244 = vunpack.c.l.b16 %v196
      %v245 = vunpack.c.l.b16 %v197
      %v246 = vunpack.c.l.b16 %v198
      %v247 = vunpack.c.l.b16 %v199
      %v248 = vunpack.c.l.b16 %v200
      %v249 = vunpack.c.l.b16 %v201
      %v250 = vpack.c.b16 %v235, %v234
      %v251 = vpack.c.b16 %v237, %v236
      %v252 = vpack.c.b16 %v239, %v238
      %v253 = vpack.c.b16 %v241, %v240
      %v254 = vpack.c.b16 %v243, %v242
      %v255 = vpack.c.b16 %v245, %v244
      %v256 = vpack.c.b16 %v247, %v246
      %v257 = vpack.c.b16 %v249, %v248
      %v282 = vunpack.c.l.b16 %v202
      %v283 = vunpack.c.l.b16 %v203
      %v284 = vunpack.c.l.b16 %v204
      %v285 = vunpack.c.l.b16 %v205
      %v286 = vunpack.c.l.b16 %v206
      %v287 = vunpack.c.l.b16 %v207
      %v288 = vunpack.c.l.b16 %v208
      %v289 = vunpack.c.l.b16 %v209
      %v290 = vunpack.c.l.b16 %v210
      %v291 = vunpack.c.l.b16 %v211
      %v292 = vunpack.c.l.b16 %v212
      %v293 = vunpack.c.l.b16 %v213
      %v294 = vunpack.c.l.b16 %v214
      %v295 = vunpack.c.l.b16 %v215
      %v296 = vunpack.c.l.b16 %v216
      %v297 = vunpack.c.l.b16 %v217
      %v298 = vpack.c.b16 %v283, %v282
      %v299 = vpack.c.b16 %v285, %v284
      %v300 = vpack.c.b16 %v287, %v286
      %v301 = vpack.c.b16 %v289, %v288
      %v302 = vpack.c.b16 %v291, %v290
      %v303 = vpack.c.b16 %v293, %v292
      %v304 = vpack.c.b16 %v295, %v294
      %v305 = vpack.c.b16 %v297, %v296
      %314 = vmatprep.subr.bf16.mxu0 0
      %315 = vmatpush1.bf16.msra.mxu0 %v298
      %316 = vmatprep.subr.bf16.mxu0 0
      %317 = vmatpush1.bf16.msra.mxu0 %v299
      %318 = vmatprep.subr.bf16.mxu0 0
      %319 = vmatpush1.bf16.msra.mxu0 %v300
      %320 = vmatprep.subr.bf16.mxu0 0
      %321 = vmatpush1.bf16.msra.mxu0 %v301
      %322 = vmatprep.subr.bf16.mxu0 0
      %323 = vmatpush1.bf16.msra.mxu0 %v302
      %324 = vmatprep.subr.bf16.mxu0 0
      %325 = vmatpush1.bf16.msra.mxu0 %v303
      %326 = vmatprep.subr.bf16.mxu0 0
      %327 = vmatpush1.bf16.msra.mxu0 %v304
      %328 = vmatprep.subr.bf16.mxu0 0
      %329 = vmatpush1.bf16.msra.mxu0 %v305
      %330 = vmatprep.subr.bf16.mxu0 0
      %331 = vmatpush1.bf16.msra.mxu0 0
      %332 = vmatprep.subr.bf16.mxu0 0
      %333 = vmatpush1.bf16.msra.mxu0 0
      %334 = vmatprep.subr.bf16.mxu0 0
      %335 = vmatpush1.bf16.msra.mxu0 0
      %336 = vmatprep.subr.bf16.mxu0 0
      %337 = vmatpush1.bf16.msra.mxu0 0
      %338 = vmatprep.subr.bf16.mxu0 0
      %339 = vmatpush1.bf16.msra.mxu0 0
      %340 = vmatprep.subr.bf16.mxu0 0
      %341 = vmatpush1.bf16.msra.mxu0 0
      %342 = vmatprep.subr.bf16.mxu0 0
      %343 = vmatpush1.bf16.msra.mxu0 0
      %344 = vmatprep.subr.bf16.mxu0 0
      %345 = vmatpush1.bf16.msra.mxu0 0
      %346 = vmatprep.mubr.bf16.mxu0 0
      %347 = vmatmul.mubr.bf16.gmra.mrb[0].mxu0 %v250
      %v348 = vpop.f32.mrb[0].mxu0
      %v349 = vadd.f32 0.0, %v348
      %v350 = vpop.f32.mrb[0].mxu0
      %v351 = vpop.f32.mrb[0].mxu0
      %v352 = vadd.f32 0.0, %v351
      %v353 = vpop.f32.mrb[0].mxu0
      %354 = vmatprep.mubr.bf16.mxu0 0
      %355 = vmatmul.mubr.bf16.gmra.mrb[0].mxu0 %v251
      %v356 = vpop.f32.mrb[0].mxu0
      %v357 = vadd.f32 0.0, %v356
      %v358 = vpop.f32.mrb[0].mxu0
      %v359 = vpop.f32.mrb[0].mxu0
      %v360 = vadd.f32 0.0, %v359
      %v361 = vpop.f32.mrb[0].mxu0
      %362 = vmatprep.mubr.bf16.mxu0 0
      %363 = vmatmul.mubr.bf16.gmra.mrb[0].mxu0 %v252
      %v364 = vpop.f32.mrb[0].mxu0
      %v365 = vadd.f32 0.0, %v364
      %v366 = vpop.f32.mrb[0].mxu0
      %v367 = vpop.f32.mrb[0].mxu0
      %v368 = vadd.f32 0.0, %v367
      %v369 = vpop.f32.mrb[0].mxu0
      %370 = vmatprep.mubr.bf16.mxu0 0
      %371 = vmatmul.mubr.bf16.gmra.mrb[0].mxu0 %v253
      %v372 = vpop.f32.mrb[0].mxu0
      %v373 = vadd.f32 0.0, %v372
      %v374 = vpop.f32.mrb[0].mxu0
      %v375 = vpop.f32.mrb[0].mxu0
      %v376 = vadd.f32 0.0, %v375
      %v377 = vpop.f32.mrb[0].mxu0
      %378 = vmatprep.mubr.bf16.mxu0 0
      %379 = vmatmul.mubr.bf16.gmra.mrb[0].mxu0 %v254
      %v380 = vpop.f32.mrb[0].mxu0
      %v381 = vadd.f32 0.0, %v380
      %v382 = vpop.f32.mrb[0].mxu0
      %v383 = vpop.f32.mrb[0].mxu0
      %v384 = vadd.f32 0.0, %v383
      %v385 = vpop.f32.mrb[0].mxu0
      %386 = vmatprep.mubr.bf16.mxu0 0
      %387 = vmatmul.mubr.bf16.gmra.mrb[0].mxu0 %v255
      %v388 = vpop.f32.mrb[0].mxu0
      %v389 = vadd.f32 0.0, %v388
      %v390 = vpop.f32.mrb[0].mxu0
      %v391 = vpop.f32.mrb[0].mxu0
      %v392 = vadd.f32 0.0, %v391
      %v393 = vpop.f32.mrb[0].mxu0
      %394 = vmatprep.mubr.bf16.mxu0 0
      %395 = vmatmul.mubr.bf16.gmra.mrb[0].mxu0 %v256
      %v396 = vpop.f32.mrb[0].mxu0
      %v397 = vadd.f32 0.0, %v396
      %v398 = vpop.f32.mrb[0].mxu0
      %v399 = vpop.f32.mrb[0].mxu0
      %v400 = vadd.f32 0.0, %v399
      %v401 = vpop.f32.mrb[0].mxu0
      %402 = vmatprep.mubr.bf16.mxu0 0
      %403 = vmatmul.mubr.bf16.gmra.mrb[0].mxu0 %v257
      %v404 = vpop.f32.mrb[0].mxu0
      %v405 = vadd.f32 0.0, %v404
      %v406 = vpop.f32.mrb[0].mxu0
      %v407 = vpop.f32.mrb[0].mxu0
      %v408 = vadd.f32 0.0, %v407
      %v409 = vpop.f32.mrb[0].mxu0
      %410 = vdwg.mxu0
      %411 = vst [vmem:[%s179] sm:$0xff] %v349
      %412 = vst [vmem:[%s179 + $0x8] sm:$0xff] %v352
      %413 = vst [vmem:[%s179 + $0x10] sm:$0xff] %v357
      %414 = vst [vmem:[%s179 + $0x18] sm:$0xff] %v360
      %415 = vst [vmem:[%s179 + $0x20] sm:$0xff] %v365
      %416 = vst [vmem:[%s179 + $0x28] sm:$0xff] %v368
      %417 = vst [vmem:[%s179 + $0x30] sm:$0xff] %v373
      %418 = vst [vmem:[%s179 + $0x38] sm:$0xff] %v376
      %419 = vst [vmem:[%s179 + $0x40] sm:$0xff] %v381
      %420 = vst [vmem:[%s179 + $0x48] sm:$0xff] %v384
      %421 = vst [vmem:[%s179 + $0x50] sm:$0xff] %v389
      %422 = vst [vmem:[%s179 + $0x58] sm:$0xff] %v392
      %423 = vst [vmem:[%s179 + $0x60] sm:$0xff] %v397
      %424 = vst [vmem:[%s179 + $0x68] sm:$0xff] %v400
      %425 = vst [vmem:[%s179 + $0x70] sm:$0xff] %v405
      %426 = vst [vmem:[%s179 + $0x78] sm:$0xff] %v408
      %v427 = vadd.f32 %v349, %v352
      %v428 = vadd.f32 %v427, %v357
      %v429 = vadd.f32 %v428, %v360
      %v430 = vadd.f32 %v429, %v365
      %v431 = vadd.f32 %v430, %v368
      %v432 = vadd.f32 %v431, %v373
      %v433 = vadd.f32 %v432, %v376
      %v434 = vadd.f32 %v433, %v381
      %v435 = vadd.f32 %v434, %v384
      %v436 = vadd.f32 %v435, %v389
      %v437 = vadd.f32 %v436, %v392
      %v438 = vadd.f32 %v437, %v397
      %v439 = vadd.f32 %v438, %v400
      %v440 = vadd.f32 %v439, %v405
      %v441 = vadd.f32 %v440, %v408
      %v442 = vrot.slane %v441, 4
      %v443 = vadd.f32 %v441, %v442
      %v444 = vrot.slane %v443, 2
      %v445 = vadd.f32 %v443, %v444
      %v446 = vrot.slane %v445, 1
      %v447 = vadd.f32 %v445, %v446
      %v448 = vmul.f32 %v349, %v349
      %v449 = vmul.f32 %v352, %v352
      %v450 = vmul.f32 %v357, %v357
      %v451 = vmul.f32 %v360, %v360
      %v452 = vmul.f32 %v365, %v365
      %v453 = vmul.f32 %v368, %v368
      %v454 = vmul.f32 %v373, %v373
      %v455 = vmul.f32 %v376, %v376
      %v456 = vmul.f32 %v381, %v381
      %v457 = vmul.f32 %v384, %v384
      %v458 = vmul.f32 %v389, %v389
      %v459 = vmul.f32 %v392, %v392
      %v460 = vmul.f32 %v397, %v397
      %v461 = vmul.f32 %v400, %v400
      %v462 = vmul.f32 %v405, %v405
      %v463 = vmul.f32 %v408, %v408
      %v464 = vadd.f32 %v448, %v449
      %v465 = vadd.f32 %v464, %v450
      %v466 = vadd.f32 %v465, %v451
      %v467 = vadd.f32 %v466, %v452
      %v468 = vadd.f32 %v467, %v453
      %v469 = vadd.f32 %v468, %v454
      %v470 = vadd.f32 %v469, %v455
      %v471 = vadd.f32 %v470, %v456
      %v472 = vadd.f32 %v471, %v457
      %v473 = vadd.f32 %v472, %v458
      %v474 = vadd.f32 %v473, %v459
      %v475 = vadd.f32 %v474, %v460
      %v476 = vadd.f32 %v475, %v461
      %v477 = vadd.f32 %v476, %v462
      %v478 = vadd.f32 %v477, %v463
      %v479 = vrot.slane %v478, 4
      %v480 = vadd.f32 %v478, %v479
      %v481 = vrot.slane %v480, 2
      %v482 = vadd.f32 %v480, %v481
      %v483 = vrot.slane %v482, 1
      %v484 = vadd.f32 %v482, %v483
      %vm485 = vcmask 1040384
      %v486 = vsel %vm485, %v447, %v484
      %vm487 = vcmask 1041408
      %v488 = vsel %vm487, %v486, 0.0
      %489 = vst [vmem:[%s184] sm:$0xff] %v488
      %s490 = smul.u32 16, %s15
      %p491 = scmp.lt.s32.totalorder %s490, 31
      %s492 = scalar_select %p491, %s490, 31
      %s493 = smul.addr %s492, 8
      %s494 = scalar_lea.vmem %s2, %s493
      %p495 = scmp.lt.s32.totalorder %s15, 1
      %s496 = scalar_select %p495, %s15, 1
      %s497 = smul.addr %s496, 8
      %s498 = scalar_lea.vmem %s3, %s497
      // Predicated region
      $region29: #{cnn_onset_forward.5} parent=27 // pred_check
        %p499 = pneg %p80
      $region30: #{cnn_onset_forward.5} parent=27 // pred_check_branch
        %501 = sbr.rel (%p499) target = $region32
      $region31: #{cnn_onset_forward.5} parent=27 // pred_region
        %s502 = smul.u32 16, %s15
      $region32: #{cnn_onset_forward.5} parent=27 // pred_fallthru
        _
      // Predicated region
      $region33: #{cnn_onset_forward.5} parent=27 // pred_check
        %p503 = pneg %p106
      $region34: #{cnn_onset_forward.5} parent=27 // pred_check_branch
        %505 = sbr.rel (%p503) target = $region36
      $region35: #{cnn_onset_forward.5} parent=27 // pred_region
        _
      $region36: #{cnn_onset_forward.5} parent=27 // pred_fallthru
        _
    $region28: #{cnn_onset_forward.5} parent=5 // pred_fallthru
      _
    %p506 = scmp.le.s32.totalorder 2, %s10
    // Predicated region
    $region37: #{cnn_onset_forward.5} parent=5 // pred_check
      %p507 = pneg %p506
    $region38: #{cnn_onset_forward.5} parent=5 // pred_check_branch
      %509 = sbr.rel (%p507) target = $region40
    $region39: #{cnn_onset_forward.5} parent=5 // pred_region
      %s510 = ssub.s32 %s10, 2
      // Predicated region
      $region41: #{cnn_onset_forward.5} parent=39 // pred_check
        %p511 = pneg %p86
      $region42: #{cnn_onset_forward.5} parent=39 // pred_check_branch
        %513 = sbr.rel (%p511) target = $region44
      $region43: #{cnn_onset_forward.5} parent=39 // pred_region
        %s514 = smul.u32 16, %s16
        %p515 = scmp.lt.s32.totalorder %s514, 31
        %s516 = scalar_select %p515, %s514, 31
        %s517 = smul.addr %s516, 8
        %s518 = scalar_lea.vmem %s2, %s517
      $region44: #{cnn_onset_forward.5} parent=39 // pred_fallthru
        _
      // Predicated region
      $region45: #{cnn_onset_forward.5} parent=39 // pred_check
        %p519 = pneg %p112
      $region46: #{cnn_onset_forward.5} parent=39 // pred_check_branch
        %521 = sbr.rel (%p519) target = $region48
      $region47: #{cnn_onset_forward.5} parent=39 // pred_region
        %p522 = scmp.lt.s32.totalorder %s16, 1
        %s523 = scalar_select %p522, %s16, 1
        %s524 = smul.addr %s523, 8
        %s525 = scalar_lea.vmem %s3, %s524
      $region48: #{cnn_onset_forward.5} parent=39 // pred_fallthru
        _
    $region40: #{cnn_onset_forward.5} parent=5 // pred_fallthru
      _
  $region6: #{cnn_onset_forward.5} parent=0 // loop_footer
    %s14 = sadd.s32 1, %s10
  $region7: #{cnn_onset_forward.5} parent=0 // loop_footer_branch
    %9 = sbr.rel target = $region3
  $region8: #{cnn_onset_forward.5} parent=0 // loop_exit
    _

// kernel: cnn_onset_forward.7
$region0: #{cnn_onset_forward.7}
  #allocation0 [shape = 'u32[]', space=smem, size = 0x4, offset = 0x4, fixed_abs, tag = 'smem constant byte address 0x4 - core index']
  #allocation1 [shape = 'u32[144,128]{1,0:T(1,128)}', space=vmem, size = 0x12000, scoped, tag = 'internal scratch']
  %s0 = inlined_call_operand.vmem [shape: bf16[256,640], index: 0, kind: input, shape index: {}]
  %s1 = inlined_call_operand.vmem [shape: bf16[640,128], index: 1, kind: input, shape index: {}]
  %s2 = inlined_call_operand.vmem [shape: f32[256,128], index: 2, kind: output, shape index: {0}]
  %s3 = inlined_call_operand.vmem [shape: f32[2,8,128], index: 3, kind: output, shape index: {1}]
  %4 = xla_tuple %s2, %s3
  %s5 = sld [smem:[#allocation0]]
  $region49: #{cnn_onset_forward.7} parent=0
    _
  %s7 = ssub.s32 1, %s5
  %s8 = scalar_select 0, %s7, %s5
  loop: start=0, step=1, limit=4
  $region2: #{cnn_onset_forward.7} parent=0 // loop_pre_header
    _
  $region3: #{cnn_onset_forward.7} parent=0 // loop_header
    %s10 = sphi 0, %s14
    %p11 = scmp.ge.s32.totalorder %s10, 4
    %s20 = sphi 0, %s22
    %s23 = sphi 0, %s20
    %s24 = sphi 0, %s23
    %s40 = sphi 0, %s24
    %s44 = sphi 0, %s44
    %s46 = sphi 0, %s44
    %s47 = sphi 0, %s46
    %s61 = sphi 0, %s47
    %s67 = sphi 0, %s69
    %s70 = sphi 0, %s67
    %s71 = sphi 0, %s70
    %s87 = sphi 0, %s71
    %s93 = sphi 0, %s95
    %s96 = sphi 0, %s93
    %s97 = sphi 0, %s96
    %s113 = sphi 0, %s97
  $region4: #{cnn_onset_forward.7} parent=0 // loop_header_branch
    %13 = sbr.rel (%p11) target = $region8
  $region5: #{cnn_onset_forward.7} parent=0 // loop_body
    %s15 = ssub.s32 %s10, 1
    %s16 = ssub.s32 %s10, 2
    %s17 = sadd.s32 %s10, 1
    %s18 = ssub.s32 %s10, %s17
    %p19 = scmp.eq.s32.totalorder %s18, 0
    %s21 = sadd.s32 %s20, 1
    %s22 = scalar_select %p19, %s20, %s21
    %p25 = pneg %p19
    %p26 = scmp.eq.s32.totalorder %s10, 1
    %p27 = por %p25, %p26
    %p28 = scmp.ne.s32.totalorder %s20, %s23
    %p29 = scmp.eq.s32.totalorder %s10, 0
    %p30 = por %p28, %p29
    %p31 = scmp.ne.s32.totalorder %s20, %s23
    %p32 = scmp.eq.s32.totalorder %s15, 1
    %p33 = por %p31, %p32
    %p34 = scmp.ne.s32.totalorder %s23, %s24
    %p35 = scmp.eq.s32.totalorder %s15, 0
    %p36 = por %p34, %p35
    %p37 = scmp.ne.s32.totalorder %s23, %s24
    %p38 = scmp.eq.s32.totalorder %s16, 1
    %p39 = por %p37, %p38
    %p41 = scmp.ne.s32.totalorder %s24, %s40
    %p42 = scmp.eq.s32.totalorder %s16, 0
    %p43 = por %p41, %p42
    %s45 = sadd.s32 %s44, 1
    %p48 = scmp.eq.s32.totalorder %s10, 1
    %p49 = scmp.ne.s32.totalorder %s44, %s46
    %p50 = scmp.eq.s32.totalorder %s10, 0
    %p51 = por %p49, %p50
    %p52 = scmp.ne.s32.totalorder %s44, %s46
    %p53 = scmp.eq.s32.totalorder %s15, 1
    %p54 = por %p52, %p53
    %p55 = scmp.ne.s32.totalorder %s46, %s47
    %p56 = scmp.eq.s32.totalorder %s15, 0
    %p57 = por %p55, %p56
    %p58 = scmp.ne.s32.totalorder %s46, %s47
    %p59 = scmp.eq.s32.totalorder %s16, 1
    %p60 = por %p58, %p59
    %p62 = scmp.ne.s32.totalorder %s47, %s61
    %p63 = scmp.eq.s32.totalorder %s16, 0
    %p64 = por %p62, %p63
    %s65 = ssub.s32 %s10, %s17
    %p66 = scmp.eq.s32.totalorder %s65, 0
    %s68 = sadd.s32 %s67, 1
    %s69 = scalar_select %p66, %s67, %s68
    %p72 = pneg %p66
    %p73 = scmp.eq.s32.totalorder %s10, 1
    %p74 = por %p72, %p73
    %p75 = scmp.ne.s32.totalorder %s67, %s70
    %p76 = scmp.eq.s32.totalorder %s10, 0
    %p77 = por %p75, %p76
    %p78 = scmp.ne.s32.totalorder %s67, %s70
    %p79 = scmp.eq.s32.totalorder %s15, 1
    %p80 = por %p78, %p79
    %p81 = scmp.ne.s32.totalorder %s70, %s71
    %p82 = scmp.eq.s32.totalorder %s15, 0
    %p83 = por %p81, %p82
    %p84 = scmp.ne.s32.totalorder %s70, %s71
    %p85 = scmp.eq.s32.totalorder %s16, 1
    %p86 = por %p84, %p85
    %p88 = scmp.ne.s32.totalorder %s71, %s87
    %p89 = scmp.eq.s32.totalorder %s16, 0
    %p90 = por %p88, %p89
    %s91 = ssub.s32 %s10, %s17
    %p92 = scmp.eq.s32.totalorder %s91, 0
    %s94 = sadd.s32 %s93, 1
    %s95 = scalar_select %p92, %s93, %s94
    %p98 = pneg %p92
    %p99 = scmp.eq.s32.totalorder %s10, 1
    %p100 = por %p98, %p99
    %p101 = scmp.ne.s32.totalorder %s93, %s96
    %p102 = scmp.eq.s32.totalorder %s10, 0
    %p103 = por %p101, %p102
    %p104 = scmp.ne.s32.totalorder %s93, %s96
    %p105 = scmp.eq.s32.totalorder %s15, 1
    %p106 = por %p104, %p105
    %p107 = scmp.ne.s32.totalorder %s96, %s97
    %p108 = scmp.eq.s32.totalorder %s15, 0
    %p109 = por %p107, %p108
    %p110 = scmp.ne.s32.totalorder %s96, %s97
    %p111 = scmp.eq.s32.totalorder %s16, 1
    %p112 = por %p110, %p111
    %p114 = scmp.ne.s32.totalorder %s97, %s113
    %p115 = scmp.eq.s32.totalorder %s16, 0
    %p116 = por %p114, %p115
    %p117 = scmp.le.s32.totalorder 1, %s10
    %p118 = scmp.lt.s32.totalorder %s10, 3
    %p119 = pnand %p117, %p118
    %p120 = pneg %p119
    // Predicated region
    $region9: #{cnn_onset_forward.7} parent=5 // pred_check
      _
    $region10: #{cnn_onset_forward.7} parent=5 // pred_check_branch
      %122 = sbr.rel (%p119) target = $region12
    $region11: #{cnn_onset_forward.7} parent=5 // pred_region
      %s123 = ssub.s32 %s10, 1
      // Predicated region
      $region13: #{cnn_onset_forward.7} parent=11 // pred_check
        %p124 = pneg %p57
      $region14: #{cnn_onset_forward.7} parent=11 // pred_check_branch
        %126 = sbr.rel (%p124) target = $region16
      $region15: #{cnn_onset_forward.7} parent=11 // pred_region
        _
      $region16: #{cnn_onset_forward.7} parent=11 // pred_fallthru
        _
    $region12: #{cnn_onset_forward.7} parent=5 // pred_fallthru
      _
    %p127 = scmp.lt.s32.totalorder %s10, 2
    // Predicated region
    $region17: #{cnn_onset_forward.7} parent=5 // pred_check
      %p128 = pneg %p127
    $region18: #{cnn_onset_forward.7} parent=5 // pred_check_branch
      %130 = sbr.rel (%p128) target = $region20
    $region19: #{cnn_onset_forward.7} parent=5 // pred_region
      // Predicated region
      $region21: #{cnn_onset_forward.7} parent=19 // pred_check
        %p131 = pneg %p30
      $region22: #{cnn_onset_forward.7} parent=19 // pred_check_branch
        %133 = sbr.rel (%p131) target = $region24
      $region23: #{cnn_onset_forward.7} parent=19 // pred_region
        %s134 = smul.u32 16, %s10
        %p135 = scmp.lt.s32.totalorder %s134, 31
        %s136 = scalar_select %p135, %s134, 31
        %s137 = smul.addr %s136, 5
        %s138 = smul.addr %s137, 4
        %s139 = scalar_lea.vmem %s0, %s138
        %s140 = smul.u32 16, %s10
      $region24: #{cnn_onset_forward.7} parent=19 // pred_fallthru
        _
    $region20: #{cnn_onset_forward.7} parent=5 // pred_fallthru
      _
    %p141 = scmp.le.s32.totalorder 1, %s10
    %p142 = scmp.lt.s32.totalorder %s10, 3
    %p143 = pnand %p141, %p142
    %p144 = pneg %p143
    // Predicated region
    $region25: #{cnn_onset_forward.7} parent=5 // pred_check
      _
    $region26: #{cnn_onset_forward.7} parent=5 // pred_check_branch
      %146 = sbr.rel (%p143) target = $region28
    $region27: #{cnn_onset_forward.7} parent=5 // pred_region
      %s147 = ssub.s32 %s10, 1
      %s148 = smul.u32 16, %s15
      %p149 = scmp.lt.s32.totalorder %s148, 31
      %s150 = scalar_select %p149, %s148, 31
      %s151 = smul.addr %s150, 5
      %s152 = smul.addr %s151, 4
      %s153 = scalar_lea.vmem %s0, %s152
      %p154 = pneg %p36
      %p155 = pneg %p33
      %p156 = pneg %p57
      %p157 = pneg %p54
      %p158 = pneg %p83
      %p159 = pneg %p80
      %s160 = smul.u32 16, %s15
      %p161 = scmp.lt.s32.totalorder %s160, 31
      %s162 = scalar_select %p161, %s160, 31
      %s163 = smul.addr %s162, 8
      %s164 = scalar_lea.vmem %s2, %s163
      %p165 = pneg %p109
      %p166 = pneg %p106
      %p167 = scmp.lt.s32.totalorder %s15, 1
      %s168 = scalar_select %p167, %s15, 1
      %s169 = smul.addr %s168, 8
      %s170 = scalar_lea.vmem %s3, %s169
      %s171 = smul.u32 16, %s15
      %p172 = scmp.lt.s32.totalorder %s171, 31
      %s173 = scalar_select %p172, %s171, 31
      %s174 = smul.addr %s173, 5
      %s175 = smul.addr %s174, 4
      %s176 = scalar_lea.vmem %s0, %s175
      %s177 = smul.u32 16, %s15
      %s178 = smul.u32 16, %s15
      %p179 = scmp.lt.s32.totalorder %s178, 31
      %s180 = scalar_select %p179, %s178, 31
      %s181 = smul.addr %s180, 8
      %s182 = scalar_lea.vmem %s2, %s181
      %s183 = smul.u32 16, %s15
      %p184 = scmp.lt.s32.totalorder %s15, 1
      %s185 = scalar_select %p184, %s15, 1
      %s186 = smul.addr %s185, 8
      %s187 = scalar_lea.vmem %s3, %s186
      %v189 = vld [vmem:[%s176] sm:$0xff]
      %v190 = vld [vmem:[%s176 + $0x8] sm:$0xff]
      %v191 = vld [vmem:[%s176 + $0x10] sm:$0xf]
      %v192 = vld [vmem:[%s176 + $0x14] sm:$0xff]
      %v193 = vld [vmem:[%s176 + $0x1c] sm:$0xff]
      %v194 = vld [vmem:[%s176 + $0x24] sm:$0xf]
      %v195 = vld [vmem:[%s176 + $0x28] sm:$0xff]
      %v196 = vld [vmem:[%s176 + $0x30] sm:$0xff]
      %v197 = vld [vmem:[%s176 + $0x38] sm:$0xf]
      %v198 = vld [vmem:[%s176 + $0x3c] sm:$0xff]
      %v199 = vld [vmem:[%s176 + $0x44] sm:$0xff]
      %v200 = vld [vmem:[%s176 + $0x4c] sm:$0xf]
      %v201 = vld [vmem:[%s176 + $0x50] sm:$0xff]
      %v202 = vld [vmem:[%s176 + $0x58] sm:$0xff]
      %v203 = vld [vmem:[%s176 + $0x60] sm:$0xf]
      %v204 = vld [vmem:[%s176 + $0x64] sm:$0xff]
      %v205 = vld [vmem:[%s176 + $0x6c] sm:$0xff]
      %v206 = vld [vmem:[%s176 + $0x74] sm:$0xf]
      %v207 = vld [vmem:[%s176 + $0x78] sm:$0xff]
      %v208 = vld [vmem:[%s176 + $0x80] sm:$0xff]
      %v209 = vld [vmem:[%s176 + $0x88] sm:$0xf]
      %v210 = vld [vmem:[%s176 + $0x8c] sm:$0xff]
      %v211 = vld [vmem:[%s176 + $0x94] sm:$0xff]
      %v212 = vld [vmem:[%s176 + $0x9c] sm:$0xf]
      %v213 = vld [vmem:[%s176 + $0xa0] sm:$0xff]
      %v214 = vld [vmem:[%s176 + $0xa8] sm:$0xff]
      %v215 = vld [vmem:[%s176 + $0xb0] sm:$0xf]
      %v216 = vld [vmem:[%s176 + $0xb4] sm:$0xff]
      %v217 = vld [vmem:[%s176 + $0xbc] sm:$0xff]
      %v218 = vld [vmem:[%s176 + $0xc4] sm:$0xf]
      %v219 = vld [vmem:[%s176 + $0xc8] sm:$0xff]
      %v220 = vld [vmem:[%s176 + $0xd0] sm:$0xff]
      %v221 = vld [vmem:[%s176 + $0xd8] sm:$0xf]
      %v222 = vld [vmem:[%s176 + $0xdc] sm:$0xff]
      %v223 = vld [vmem:[%s176 + $0xe4] sm:$0xff]
      %v224 = vld [vmem:[%s176 + $0xec] sm:$0xf]
      %v225 = vld [vmem:[%s176 + $0xf0] sm:$0xff]
      %v226 = vld [vmem:[%s176 + $0xf8] sm:$0xff]
      %v227 = vld [vmem:[%s176 + $0x100] sm:$0xf]
      %v228 = vld [vmem:[%s176 + $0x104] sm:$0xff]
      %v229 = vld [vmem:[%s176 + $0x10c] sm:$0xff]
      %v230 = vld [vmem:[%s176 + $0x114] sm:$0xf]
      %v231 = vld [vmem:[%s176 + $0x118] sm:$0xff]
      %v232 = vld [vmem:[%s176 + $0x120] sm:$0xff]
      %v233 = vld [vmem:[%s176 + $0x128] sm:$0xf]
      %v234 = vld [vmem:[%s176 + $0x12c] sm:$0xff]
      %v235 = vld [vmem:[%s176 + $0x134] sm:$0xff]
      %v236 = vld [vmem:[%s176 + $0x13c] sm:$0xf]
      %v237 = vld [vmem:[%s1] sm:$0xf]
      %v238 = vld [vmem:[%s1 + $0x4] sm:$0xf]
      %v239 = vld [vmem:[%s1 + $0x8] sm:$0xf]
      %v240 = vld [vmem:[%s1 + $0xc] sm:$0xf]
      %v241 = vld [vmem:[%s1 + $0x10] sm:$0xf]
      %v242 = vld [vmem:[%s1 + $0x14] sm:$0xf]
      %v243 = vld [vmem:[%s1 + $0x18] sm:$0xf]
      %v244 = vld [vmem:[%s1 + $0x1c] sm:$0xf]
      %v245 = vld [vmem:[%s1 + $0x20] sm:$0xf]
      %v246 = vld [vmem:[%s1 + $0x24] sm:$0xf]
      %v247 = vld [vmem:[%s1 + $0x28] sm:$0xf]
      %v248 = vld [vmem:[%s1 + $0x2c] sm:$0xf]
      %v249 = vld [vmem:[%s1 + $0x30] sm:$0xf]
      %v250 = vld [vmem:[%s1 + $0x34] sm:$0xf]
      %v251 = vld [vmem:[%s1 + $0x38] sm:$0xf]
      %v252 = vld [vmem:[%s1 + $0x3c] sm:$0xf]
      %v253 = vld [vmem:[%s1 + $0x40] sm:$0xf]
      %v254 = vld [vmem:[%s1 + $0x44] sm:$0xf]
      %v255 = vld [vmem:[%s1 + $0x48] sm:$0xf]
      %v256 = vld [vmem:[%s1 + $0x4c] sm:$0xf]
      %v257 = vld [vmem:[%s1 + $0x50] sm:$0xf]
      %v258 = vld [vmem:[%s1 + $0x54] sm:$0xf]
      %v259 = vld [vmem:[%s1 + $0x58] sm:$0xf]
      %v260 = vld [vmem:[%s1 + $0x5c] sm:$0xf]
      %v261 = vld [vmem:[%s1 + $0x60] sm:$0xf]
      %v262 = vld [vmem:[%s1 + $0x64] sm:$0xf]
      %v263 = vld [vmem:[%s1 + $0x68] sm:$0xf]
      %v264 = vld [vmem:[%s1 + $0x6c] sm:$0xf]
      %v265 = vld [vmem:[%s1 + $0x70] sm:$0xf]
      %v266 = vld [vmem:[%s1 + $0x74] sm:$0xf]
      %v267 = vld [vmem:[%s1 + $0x78] sm:$0xf]
      %v268 = vld [vmem:[%s1 + $0x7c] sm:$0xf]
      %v269 = vld [vmem:[%s1 + $0x80] sm:$0xf]
      %v270 = vld [vmem:[%s1 + $0x84] sm:$0xf]
      %v271 = vld [vmem:[%s1 + $0x88] sm:$0xf]
      %v272 = vld [vmem:[%s1 + $0x8c] sm:$0xf]
      %v273 = vld [vmem:[%s1 + $0x90] sm:$0xf]
      %v274 = vld [vmem:[%s1 + $0x94] sm:$0xf]
      %v275 = vld [vmem:[%s1 + $0x98] sm:$0xf]
      %v276 = vld [vmem:[%s1 + $0x9c] sm:$0xf]
      %v277 = vld [vmem:[%s1 + $0xa0] sm:$0xf]
      %v278 = vld [vmem:[%s1 + $0xa4] sm:$0xf]
      %v279 = vld [vmem:[%s1 + $0xa8] sm:$0xf]
      %v280 = vld [vmem:[%s1 + $0xac] sm:$0xf]
      %v281 = vld [vmem:[%s1 + $0xb0] sm:$0xf]
      %v282 = vld [vmem:[%s1 + $0xb4] sm:$0xf]
      %v283 = vld [vmem:[%s1 + $0xb8] sm:$0xf]
      %v284 = vld [vmem:[%s1 + $0xbc] sm:$0xf]
      %v285 = vld [vmem:[%s1 + $0xc0] sm:$0xf]
      %v286 = vld [vmem:[%s1 + $0xc4] sm:$0xf]
      %v287 = vld [vmem:[%s1 + $0xc8] sm:$0xf]
      %v288 = vld [vmem:[%s1 + $0xcc] sm:$0xf]
      %v289 = vld [vmem:[%s1 + $0xd0] sm:$0xf]
      %v290 = vld [vmem:[%s1 + $0xd4] sm:$0xf]
      %v291 = vld [vmem:[%s1 + $0xd8] sm:$0xf]
      %v292 = vld [vmem:[%s1 + $0xdc] sm:$0xf]
      %v293 = vld [vmem:[%s1 + $0xe0] sm:$0xf]
      %v294 = vld [vmem:[%s1 + $0xe4] sm:$0xf]
      %v295 = vld [vmem:[%s1 + $0xe8] sm:$0xf]
      %v296 = vld [vmem:[%s1 + $0xec] sm:$0xf]
      %v297 = vld [vmem:[%s1 + $0xf0] sm:$0xf]
      %v298 = vld [vmem:[%s1 + $0xf4] sm:$0xf]
      %v299 = vld [vmem:[%s1 + $0xf8] sm:$0xf]
      %v300 = vld [vmem:[%s1 + $0xfc] sm:$0xf]
      %v301 = vld [vmem:[%s1 + $0x100] sm:$0xf]
      %v302 = vld [vmem:[%s1 + $0x104] sm:$0xf]
      %v303 = vld [vmem:[%s1 + $0x108] sm:$0xf]
      %v304 = vld [vmem:[%s1 + $0x10c] sm:$0xf]
      %v305 = vld [vmem:[%s1 + $0x110] sm:$0xf]
      %v306 = vld [vmem:[%s1 + $0x114] sm:$0xf]
      %v307 = vld [vmem:[%s1 + $0x118] sm:$0xf]
      %v308 = vld [vmem:[%s1 + $0x11c] sm:$0xf]
      %v309 = vld [vmem:[%s1 + $0x120] sm:$0xf]
      %v310 = vld [vmem:[%s1 + $0x124] sm:$0xf]
      %v311 = vld [vmem:[%s1 + $0x128] sm:$0xf]
      %v312 = vld [vmem:[%s1 + $0x12c] sm:$0xf]
      %v313 = vld [vmem:[%s1 + $0x130] sm:$0xf]
      %v314 = vld [vmem:[%s1 + $0x134] sm:$0xf]
      %v315 = vld [vmem:[%s1 + $0x138] sm:$0xf]
      %v316 = vld [vmem:[%s1 + $0x13c] sm:$0xf]
      %v365 = vunpack.c.l.b16 %v189
      %v366 = vunpack.c.h.b16 %v189
      %v367 = vunpack.c.l.b16 %v190
      %v368 = vunpack.c.h.b16 %v190
      %v369 = vunpack.c.l.b16 %v191
      %v370 = vunpack.c.l.b16 %v192
      %v371 = vunpack.c.h.b16 %v192
      %v372 = vunpack.c.l.b16 %v193
      %v373 = vunpack.c.h.b16 %v193
      %v374 = vunpack.c.l.b16 %v194
      %v375 = vunpack.c.l.b16 %v195
      %v376 = vunpack.c.h.b16 %v195
      %v377 = vunpack.c.l.b16 %v196
      %v378 = vunpack.c.h.b16 %v196
      %v379 = vunpack.c.l.b16 %v197
      %v380 = vunpack.c.l.b16 %v198
      %v381 = vunpack.c.h.b16 %v198
      %v382 = vunpack.c.l.b16 %v199
      %v383 = vunpack.c.h.b16 %v199
      %v384 = vunpack.c.l.b16 %v200
      %v385 = vunpack.c.l.b16 %v201
      %v386 = vunpack.c.h.b16 %v201
      %v387 = vunpack.c.l.b16 %v202
      %v388 = vunpack.c.h.b16 %v202
      %v389 = vunpack.c.l.b16 %v203
      %v390 = vunpack.c.l.b16 %v204
      %v391 = vunpack.c.h.b16 %v204
      %v392 = vunpack.c.l.b16 %v205
      %v393 = vunpack.c.h.b16 %v205
      %v394 = vunpack.c.l.b16 %v206
      %v395 = vunpack.c.l.b16 %v207
      %v396 = vunpack.c.h.b16 %v207
      %v397 = vunpack.c.l.b16 %v208
      %v398 = vunpack.c.h.b16 %v208
      %v399 = vunpack.c.l.b16 %v209
      %v400 = vunpack.c.l.b16 %v210
      %v401 = vunpack.c.h.b16 %v210
      %v402 = vunpack.c.l.b16 %v211
      %v403 = vunpack.c.h.b16 %v211
      %v404 = vunpack.c.l.b16 %v212
      %v405 = vunpack.c.l.b16 %v213
      %v406 = vunpack.c.h.b16 %v213
      %v407 = vunpack.c.l.b16 %v214
      %v408 = vunpack.c.h.b16 %v214
      %v409 = vunpack.c.l.b16 %v215
      %v410 = vunpack.c.l.b16 %v216
      %v411 = vunpack.c.h.b16 %v216
      %v412 = vunpack.c.l.b16 %v217
      %v413 = vunpack.c.h.b16 %v217
      %v414 = vunpack.c.l.b16 %v218
      %v415 = vunpack.c.l.b16 %v219
      %v416 = vunpack.c.h.b16 %v219
      %v417 = vunpack.c.l.b16 %v220
      %v418 = vunpack.c.h.b16 %v220
      %v419 = vunpack.c.l.b16 %v221
      %v420 = vunpack.c.l.b16 %v222
      %v421 = vunpack.c.h.b16 %v222
      %v422 = vunpack.c.l.b16 %v223
      %v423 = vunpack.c.h.b16 %v223
      %v424 = vunpack.c.l.b16 %v224
      %v425 = vunpack.c.l.b16 %v225
      %v426 = vunpack.c.h.b16 %v225
      %v427 = vunpack.c.l.b16 %v226
      %v428 = vunpack.c.h.b16 %v226
      %v429 = vunpack.c.l.b16 %v227
      %v430 = vunpack.c.l.b16 %v228
      %v431 = vunpack.c.h.b16 %v228
      %v432 = vunpack.c.l.b16 %v229
      %v433 = vunpack.c.h.b16 %v229
      %v434 = vunpack.c.l.b16 %v230
      %v435 = vunpack.c.l.b16 %v231
      %v436 = vunpack.c.h.b16 %v231
      %v437 = vunpack.c.l.b16 %v232
      %v438 = vunpack.c.h.b16 %v232
      %v439 = vunpack.c.l.b16 %v233
      %v440 = vunpack.c.l.b16 %v234
      %v441 = vunpack.c.h.b16 %v234
      %v442 = vunpack.c.l.b16 %v235
      %v443 = vunpack.c.h.b16 %v235
      %v444 = vunpack.c.l.b16 %v236
      %v445 = vpack.c.b16 %v370, %v365
      %v446 = vpack.c.b16 %v371, %v366
      %v447 = vpack.c.b16 %v372, %v367
      %v448 = vpack.c.b16 %v373, %v368
      %v449 = vpack.c.b16 %v374, %v369
      %v450 = vpack.c.b16 %v380, %v375
      %v451 = vpack.c.b16 %v381, %v376
      %v452 = vpack.c.b16 %v382, %v377
      %v453 = vpack.c.b16 %v383, %v378
      %v454 = vpack.c.b16 %v384, %v379
      %v455 = vpack.c.b16 %v390, %v385
      %v456 = vpack.c.b16 %v391, %v386
      %v457 = vpack.c.b16 %v392, %v387
      %v458 = vpack.c.b16 %v393, %v388
      %v459 = vpack.c.b16 %v394, %v389
      %v460 = vpack.c.b16 %v400, %v395
      %v461 = vpack.c.b16 %v401, %v396
      %v462 = vpack.c.b16 %v402, %v397
      %v463 = vpack.c.b16 %v403, %v398
      %v464 = vpack.c.b16 %v404, %v399
      %v465 = vpack.c.b16 %v410, %v405
      %v466 = vpack.c.b16 %v411, %v406
      %v467 = vpack.c.b16 %v412, %v407
      %v468 = vpack.c.b16 %v413, %v408
      %v469 = vpack.c.b16 %v414, %v409
      %v470 = vpack.c.b16 %v420, %v415
      %v471 = vpack.c.b16 %v421, %v416
      %v472 = vpack.c.b16 %v422, %v417
      %v473 = vpack.c.b16 %v423, %v418
      %v474 = vpack.c.b16 %v424, %v419
      %v475 = vpack.c.b16 %v430, %v425
      %v476 = vpack.c.b16 %v431, %v426
      %v477 = vpack.c.b16 %v432, %v427
      %v478 = vpack.c.b16 %v433, %v428
      %v479 = vpack.c.b16 %v434, %v429
      %v480 = vpack.c.b16 %v440, %v435
      %v481 = vpack.c.b16 %v441, %v436
      %v482 = vpack.c.b16 %v442, %v437
      %v483 = vpack.c.b16 %v443, %v438
      %v484 = vpack.c.b16 %v444, %v439
      %v605 = vunpack.c.l.b16 %v237
      %v606 = vunpack.c.l.b16 %v238
      %v607 = vunpack.c.l.b16 %v239
      %v608 = vunpack.c.l.b16 %v240
      %v609 = vunpack.c.l.b16 %v241
      %v610 = vunpack.c.l.b16 %v242
      %v611 = vunpack.c.l.b16 %v243
      %v612 = vunpack.c.l.b16 %v244
      %v613 = vunpack.c.l.b16 %v245
      %v614 = vunpack.c.l.b16 %v246
      %v615 = vunpack.c.l.b16 %v247
      %v616 = vunpack.c.l.b16 %v248
      %v617 = vunpack.c.l.b16 %v249
      %v618 = vunpack.c.l.b16 %v250
      %v619 = vunpack.c.l.b16 %v251
      %v620 = vunpack.c.l.b16 %v252
      %v621 = vunpack.c.l.b16 %v253
      %v622 = vunpack.c.l.b16 %v254
      %v623 = vunpack.c.l.b16 %v255
      %v624 = vunpack.c.l.b16 %v256
      %v625 = vunpack.c.l.b16 %v257
      %v626 = vunpack.c.l.b16 %v258
      %v627 = vunpack.c.l.b16 %v259
      %v628 = vunpack.c.l.b16 %v260
      %v629 = vunpack.c.l.b16 %v261
      %v630 = vunpack.c.l.b16 %v262
      %v631 = vunpack.c.l.b16 %v263
      %v632 = vunpack.c.l.b16 %v264
      %v633 = vunpack.c.l.b16 %v265
      %v634 = vunpack.c.l.b16 %v266
      %v635 = vunpack.c.l.b16 %v267
      %v636 = vunpack.c.l.b16 %v268
      %v637 = vunpack.c.l.b16 %v269
      %v638 = vunpack.c.l.b16 %v270
      %v639 = vunpack.c.l.b16 %v271
      %v640 = vunpack.c.l.b16 %v272
      %v641 = vunpack.c.l.b16 %v273
      %v642 = vunpack.c.l.b16 %v274
      %v643 = vunpack.c.l.b16 %v275
      %v644 = vunpack.c.l.b16 %v276
      %v645 = vunpack.c.l.b16 %v277
      %v646 = vunpack.c.l.b16 %v278
      %v647 = vunpack.c.l.b16 %v279
      %v648 = vunpack.c.l.b16 %v280
      %v649 = vunpack.c.l.b16 %v281
      %v650 = vunpack.c.l.b16 %v282
      %v651 = vunpack.c.l.b16 %v283
      %v652 = vunpack.c.l.b16 %v284
      %v653 = vunpack.c.l.b16 %v285
      %v654 = vunpack.c.l.b16 %v286
      %v655 = vunpack.c.l.b16 %v287
      %v656 = vunpack.c.l.b16 %v288
      %v657 = vunpack.c.l.b16 %v289
      %v658 = vunpack.c.l.b16 %v290
      %v659 = vunpack.c.l.b16 %v291
      %v660 = vunpack.c.l.b16 %v292
      %v661 = vunpack.c.l.b16 %v293
      %v662 = vunpack.c.l.b16 %v294
      %v663 = vunpack.c.l.b16 %v295
      %v664 = vunpack.c.l.b16 %v296
      %v665 = vunpack.c.l.b16 %v297
      %v666 = vunpack.c.l.b16 %v298
      %v667 = vunpack.c.l.b16 %v299
      %v668 = vunpack.c.l.b16 %v300
      %v669 = vunpack.c.l.b16 %v301
      %v670 = vunpack.c.l.b16 %v302
      %v671 = vunpack.c.l.b16 %v303
      %v672 = vunpack.c.l.b16 %v304
      %v673 = vunpack.c.l.b16 %v305
      %v674 = vunpack.c.l.b16 %v306
      %v675 = vunpack.c.l.b16 %v307
      %v676 = vunpack.c.l.b16 %v308
      %v677 = vunpack.c.l.b16 %v309
      %v678 = vunpack.c.l.b16 %v310
      %v679 = vunpack.c.l.b16 %v311
      %v680 = vunpack.c.l.b16 %v312
      %v681 = vunpack.c.l.b16 %v313
      %v682 = vunpack.c.l.b16 %v314
      %v683 = vunpack.c.l.b16 %v315
      %v684 = vunpack.c.l.b16 %v316
      %v685 = vpack.c.b16 %v606, %v605
      %v686 = vpack.c.b16 %v608, %v607
      %v687 = vpack.c.b16 %v610, %v609
      %v688 = vpack.c.b16 %v612, %v611
      %v689 = vpack.c.b16 %v614, %v613
      %v690 = vpack.c.b16 %v616, %v615
      %v691 = vpack.c.b16 %v618, %v617
      %v692 = vpack.c.b16 %v620, %v619
      %v693 = vpack.c.b16 %v622, %v621
      %v694 = vpack.c.b16 %v624, %v623
      %v695 = vpack.c.b16 %v626, %v625
      %v696 = vpack.c.b16 %v628, %v627
      %v697 = vpack.c.b16 %v630, %v629
      %v698 = vpack.c.b16 %v632, %v631
      %v699 = vpack.c.b16 %v634, %v633
      %v700 = vpack.c.b16 %v636, %v635
      %v701 = vpack.c.b16 %v638, %v637
      %v702 = vpack.c.b16 %v640, %v639
      %v703 = vpack.c.b16 %v642, %v641
      %v704 = vpack.c.b16 %v644, %v643
      %v705 = vpack.c.b16 %v646, %v645
      %v706 = vpack.c.b16 %v648, %v647
      %v707 = vpack.c.b16 %v650, %v649
      %v708 = vpack.c.b16 %v652, %v651
      %v709 = vpack.c.b16 %v654, %v653
      %v710 = vpack.c.b16 %v656, %v655
      %v711 = vpack.c.b16 %v658, %v657
      %v712 = vpack.c.b16 %v660, %v659
      %v713 = vpack.c.b16 %v662, %v661
      %v714 = vpack.c.b16 %v664, %v663
      %v715 = vpack.c.b16 %v666, %v665
      %v716 = vpack.c.b16 %v668, %v667
      %v717 = vpack.c.b16 %v670, %v669
      %v718 = vpack.c.b16 %v672, %v671
      %v719 = vpack.c.b16 %v674, %v673
      %v720 = vpack.c.b16 %v676, %v675
      %v721 = vpack.c.b16 %v678, %v677
      %v722 = vpack.c.b16 %v680, %v679
      %v723 = vpack.c.b16 %v682, %v681
      %v724 = vpack.c.b16 %v684, %v683
      %765 = vmatprep.subr.bf16.mxu0 0
      %766 = vmatpush1.bf16.msra.mxu0 %v685
      %767 = vmatprep.subr.bf16.mxu0 0
      %768 = vmatpush1.bf16.msra.mxu0 %v686
      %769 = vmatprep.subr.bf16.mxu0 0
      %770 = vmatpush1.bf16.msra.mxu0 %v687
      %771 = vmatprep.subr.bf16.mxu0 0
      %772 = vmatpush1.bf16.msra.mxu0 %v688
      %773 = vmatprep.subr.bf16.mxu0 0
      %774 = vmatpush1.bf16.msra.mxu0 %v689
      %775 = vmatprep.subr.bf16.mxu0 0
      %776 = vmatpush1.bf16.msra.mxu0 %v690
      %777 = vmatprep.subr.bf16.mxu0 0
      %778 = vmatpush1.bf16.msra.mxu0 %v691
      %779 = vmatprep.subr.bf16.mxu0 0
      %780 = vmatpush1.bf16.msra.mxu0 %v692
      %781 = vmatprep.subr.bf16.mxu0 0
      %782 = vmatpush1.bf16.msra.mxu0 %v693
      %783 = vmatprep.subr.bf16.mxu0 0
      %784 = vmatpush1.bf16.msra.mxu0 %v694
      %785 = vmatprep.subr.bf16.mxu0 0
      %786 = vmatpush1.bf16.msra.mxu0 %v695
      %787 = vmatprep.subr.bf16.mxu0 0
      %788 = vmatpush1.bf16.msra.mxu0 %v696
      %789 = vmatprep.subr.bf16.mxu0 0
      %790 = vmatpush1.bf16.msra.mxu0 %v697
      %791 = vmatprep.subr.bf16.mxu0 0
      %792 = vmatpush1.bf16.msra.mxu0 %v698
      %793 = vmatprep.subr.bf16.mxu0 0
      %794 = vmatpush1.bf16.msra.mxu0 %v699
      %795 = vmatprep.subr.bf16.mxu0 0
      %796 = vmatpush1.bf16.msra.mxu0 %v700
      %797 = vmatprep.mubr.bf16.mxu0 %v446
      %798 = vmatmul.mubr.bf16.gmra.mrb[0].mxu0 %v445
      %v799 = vpop.f32.mrb[0].mxu0
      %v800 = vadd.f32 0.0, %v799
      %v801 = vpop.f32.mrb[0].mxu0
      %v802 = vpop.f32.mrb[0].mxu0
      %v803 = vadd.f32 0.0, %v802
      %v804 = vpop.f32.mrb[0].mxu0
      %805 = vmatprep.mubr.bf16.mxu0 %v451
      %806 = vmatmul.mubr.bf16.gmra.mrb[0].mxu0 %v450
      %v807 = vpop.f32.mrb[0].mxu0
      %v808 = vadd.f32 0.0, %v807
      %v809 = vpop.f32.mrb[0].mxu0
      %v810 = vpop.f32.mrb[0].mxu0
      %v811 = vadd.f32 0.0, %v810
      %v812 = vpop.f32.mrb[0].mxu0
      %813 = vmatprep.mubr.bf16.mxu0 %v456
      %814 = vmatmul.mubr.bf16.gmra.mrb[0].mxu0 %v455
      %v815 = vpop.f32.mrb[0].mxu0
      %v816 = vadd.f32 0.0, %v815
      %v817 = vpop.f32.mrb[0].mxu0
      %v818 = vpop.f32.mrb[0].mxu0
      %v819 = vadd.f32 0.0, %v818
      %v820 = vpop.f32.mrb[0].mxu0
      %821 = vmatprep.mubr.bf16.mxu0 %v461
      %822 = vmatmul.mubr.bf16.gmra.mrb[0].mxu0 %v460
      %v823 = vpop.f32.mrb[0].mxu0
      %v824 = vadd.f32 0.0, %v823
      %v825 = vpop.f32.mrb[0].mxu0
      %v826 = vpop.f32.mrb[0].mxu0
      %v827 = vadd.f32 0.0, %v826
      %v828 = vpop.f32.mrb[0].mxu0
      %829 = vmatprep.mubr.bf16.mxu0 %v466
      %830 = vmatmul.mubr.bf16.gmra.mrb[0].mxu0 %v465
      %v831 = vpop.f32.mrb[0].mxu0
      %v832 = vadd.f32 0.0, %v831
      %v833 = vpop.f32.mrb[0].mxu0
      %v834 = vpop.f32.mrb[0].mxu0
      %v835 = vadd.f32 0.0, %v834
      %v836 = vpop.f32.mrb[0].mxu0
      %837 = vmatprep.mubr.bf16.mxu0 %v471
      %838 = vmatmul.mubr.bf16.gmra.mrb[0].mxu0 %v470
      %v839 = vpop.f32.mrb[0].mxu0
      %v840 = vadd.f32 0.0, %v839
      %v841 = vpop.f32.mrb[0].mxu0
      %v842 = vpop.f32.mrb[0].mxu0
      %v843 = vadd.f32 0.0, %v842
      %v844 = vpop.f32.mrb[0].mxu0
      %845 = vmatprep.mubr.bf16.mxu0 %v476
      %846 = vmatmul.mubr.bf16.gmra.mrb[0].mxu0 %v475
      %v847 = vpop.f32.mrb[0].mxu0
      %v848 = vadd.f32 0.0, %v847
      %v849 = vpop.f32.mrb[0].mxu0
      %v850 = vpop.f32.mrb[0].mxu0
      %v851 = vadd.f32 0.0, %v850
      %v852 = vpop.f32.mrb[0].mxu0
      %853 = vmatprep.mubr.bf16.mxu0 %v481
      %854 = vmatmul.mubr.bf16.gmra.mrb[0].mxu0 %v480
      %v855 = vpop.f32.mrb[0].mxu0
      %v856 = vadd.f32 0.0, %v855
      %v857 = vpop.f32.mrb[0].mxu0
      %v858 = vpop.f32.mrb[0].mxu0
      %v859 = vadd.f32 0.0, %v858
      %v860 = vpop.f32.mrb[0].mxu0
      %861 = vdwg.mxu0
      %862 = vmatprep.subr.bf16.mxu0 0
      %863 = vmatpush1.bf16.msra.mxu0 %v701
      %864 = vmatprep.subr.bf16.mxu0 0
      %865 = vmatpush1.bf16.msra.mxu0 %v702
      %866 = vmatprep.subr.bf16.mxu0 0
      %867 = vmatpush1.bf16.msra.mxu0 %v703
      %868 = vmatprep.subr.bf16.mxu0 0
      %869 = vmatpush1.bf16.msra.mxu0 %v704
      %870 = vmatprep.subr.bf16.mxu0 0
      %871 = vmatpush1.bf16.msra.mxu0 %v705
      %872 = vmatprep.subr.bf16.mxu0 0
      %873 = vmatpush1.bf16.msra.mxu0 %v706
      %874 = vmatprep.subr.bf16.mxu0 0
      %875 = vmatpush1.bf16.msra.mxu0 %v707
      %876 = vmatprep.subr.bf16.mxu0 0
      %877 = vmatpush1.bf16.msra.mxu0 %v708
      %878 = vmatprep.subr.bf16.mxu0 0
      %879 = vmatpush1.bf16.msra.mxu0 %v709
      %880 = vmatprep.subr.bf16.mxu0 0
      %881 = vmatpush1.bf16.msra.mxu0 %v710
      %882 = vmatprep.subr.bf16.mxu0 0
      %883 = vmatpush1.bf16.msra.mxu0 %v711
      %884 = vmatprep.subr.bf16.mxu0 0
      %885 = vmatpush1.bf16.msra.mxu0 %v712
      %886 = vmatprep.subr.bf16.mxu0 0
      %887 = vmatpush1.bf16.msra.mxu0 %v713
      %888 = vmatprep.subr.bf16.mxu0 0
      %889 = vmatpush1.bf16.msra.mxu0 %v714
      %890 = vmatprep.subr.bf16.mxu0 0
      %891 = vmatpush1.bf16.msra.mxu0 %v715
      %892 = vmatprep.subr.bf16.mxu0 0
      %893 = vmatpush1.bf16.msra.mxu0 %v716
      %894 = vmatprep.mubr.bf16.mxu0 %v448
      %895 = vmatmul.mubr.bf16.gmra.mrb[0].mxu0 %v447
      %v896 = vpop.f32.mrb[0].mxu0
      %v897 = vadd.f32 %v800, %v896
      %v898 = vpop.f32.mrb[0].mxu0
      %v899 = vpop.f32.mrb[0].mxu0
      %v900 = vadd.f32 %v803, %v899
      %v901 = vpop.f32.mrb[0].mxu0
      %902 = vmatprep.mubr.bf16.mxu0 %v453
      %903 = vmatmul.mubr.bf16.gmra.mrb[0].mxu0 %v452
      %v904 = vpop.f32.mrb[0].mxu0
      %v905 = vadd.f32 %v808, %v904
      %v906 = vpop.f32.mrb[0].mxu0
      %v907 = vpop.f32.mrb[0].mxu0
      %v908 = vadd.f32 %v811, %v907
      %v909 = vpop.f32.mrb[0].mxu0
      %910 = vmatprep.mubr.bf16.mxu0 %v458
      %911 = vmatmul.mubr.bf16.gmra.mrb[0].mxu0 %v457
      %v912 = vpop.f32.mrb[0].mxu0
      %v913 = vadd.f32 %v816, %v912
      %v914 = vpop.f32.mrb[0].mxu0
      %v915 = vpop.f32.mrb[0].mxu0
      %v916 = vadd.f32 %v819, %v915
      %v917 = vpop.f32.mrb[0].mxu0
      %918 = vmatprep.mubr.bf16.mxu0 %v463
      %919 = vmatmul.mubr.bf16.gmra.mrb[0].mxu0 %v462
      %v920 = vpop.f32.mrb[0].mxu0
      %v921 = vadd.f32 %v824, %v920
      %v922 = vpop.f32.mrb[0].mxu0
      %v923 = vpop.f32.mrb[0].mxu0
      %v924 = vadd.f32 %v827, %v923
      %v925 = vpop.f32.mrb[0].mxu0
      %926 = vmatprep.mubr.bf16.mxu0 %v468
      %927 = vmatmul.mubr.bf16.gmra.mrb[0].mxu0 %v467
      %v928 = vpop.f32.mrb[0].mxu0
      %v929 = vadd.f32 %v832, %v928
      %v930 = vpop.f32.mrb[0].mxu0
      %v931 = vpop.f32.mrb[0].mxu0
      %v932 = vadd.f32 %v835, %v931
      %v933 = vpop.f32.mrb[0].mxu0
      %934 = vmatprep.mubr.bf16.mxu0 %v473
      %935 = vmatmul.mubr.bf16.gmra.mrb[0].mxu0 %v472
      %v936 = vpop.f32.mrb[0].mxu0
      %v937 = vadd.f32 %v840, %v936
      %v938 = vpop.f32.mrb[0].mxu0
      %v939 = vpop.f32.mrb[0].mxu0
      %v940 = vadd.f32 %v843, %v939
      %v941 = vpop.f32.mrb[0].mxu0
      %942 = vmatprep.mubr.bf16.mxu0 %v478
      %943 = vmatmul.mubr.bf16.gmra.mrb[0].mxu0 %v477
      %v944 = vpop.f32.mrb[0].mxu0
      %v945 = vadd.f32 %v848, %v944
      %v946 = vpop.f32.mrb[0].mxu0
      %v947 = vpop.f32.mrb[0].mxu0
      %v948 = vadd.f32 %v851, %v947
      %v949 = vpop.f32.mrb[0].mxu0
      %950 = vmatprep.mubr.bf16.mxu0 %v483
      %951 = vmatmul.mubr.bf16.gmra.mrb[0].mxu0 %v482
      %v952 = vpop.f32.mrb[0].mxu0
      %v953 = vadd.f32 %v856, %v952
      %v954 = vpop.f32.mrb[0].mxu0
      %v955 = vpop.f32.mrb[0].mxu0
      %v956 = vadd.f32 %v859, %v955
      %v957 = vpop.f32.mrb[0].mxu0
      %958 = vdwg.mxu0
      %959 = vmatprep.subr.bf16.mxu0 0
      %960 = vmatpush1.bf16.msra.mxu0 %v717
      %961 = vmatprep.subr.bf16.mxu0 0
      %962 = vmatpush1.bf16.msra.mxu0 %v718
      %963 = vmatprep.subr.bf16.mxu0 0
      %964 = vmatpush1.bf16.msra.mxu0 %v719
      %965 = vmatprep.subr.bf16.mxu0 0
      %966 = vmatpush1.bf16.msra.mxu0 %v720
      %967 = vmatprep.subr.bf16.mxu0 0
      %968 = vmatpush1.bf16.msra.mxu0 %v721
      %969 = vmatprep.subr.bf16.mxu0 0
      %970 = vmatpush1.bf16.msra.mxu0 %v722
      %971 = vmatprep.subr.bf16.mxu0 0
      %972 = vmatpush1.bf16.msra.mxu0 %v723
      %973 = vmatprep.subr.bf16.mxu0 0
      %974 = vmatpush1.bf16.msra.mxu0 %v724
      %975 = vmatprep.subr.bf16.mxu0 0
      %976 = vmatpush1.bf16.msra.mxu0 0
      %977 = vmatprep.subr.bf16.mxu0 0
      %978 = vmatpush1.bf16.msra.mxu0 0
      %979 = vmatprep.subr.bf16.mxu0 0
      %980 = vmatpush1.bf16.msra.mxu0 0
      %981 = vmatprep.subr.bf16.mxu0 0
      %982 = vmatpush1.bf16.msra.mxu0 0
      %983 = vmatprep.subr.bf16.mxu0 0
      %984 = vmatpush1.bf16.msra.mxu0 0
      %985 = vmatprep.subr.bf16.mxu0 0
      %986 = vmatpush1.bf16.msra.mxu0 0
      %987 = vmatprep.subr.bf16.mxu0 0
      %988 = vmatpush1.bf16.msra.mxu0 0
      %989 = vmatprep.subr.bf16.mxu0 0
      %990 = vmatpush1.bf16.msra.mxu0 0
      %991 = vmatprep.mubr.bf16.mxu0 0
      %992 = vmatmul.mubr.bf16.gmra.mrb[0].mxu0 %v449
      %v993 = vpop.f32.mrb[0].mxu0
      %v994 = vadd.f32 %v897, %v993
      %v995 = vpop.f32.mrb[0].mxu0
      %v996 = vpop.f32.mrb[0].mxu0
      %v997 = vadd.f32 %v900, %v996
      %v998 = vpop.f32.mrb[0].mxu0
      %999 = vmatprep.mubr.bf16.mxu0 0
      %1000 = vmatmul.mubr.bf16.gmra.mrb[0].mxu0 %v454
      %v1001 = vpop.f32.mrb[0].mxu0
      %v1002 = vadd.f32 %v905, %v1001
      %v1003 = vpop.f32.mrb[0].mxu0
      %v1004 = vpop.f32.mrb[0].mxu0
      %v1005 = vadd.f32 %v908, %v1004
      %v1006 = vpop.f32.mrb[0].mxu0
      %1007 = vmatprep.mubr.bf16.mxu0 0
      %1008 = vmatmul.mubr.bf16.gmra.mrb[0].mxu0 %v459
      %v1009 = vpop.f32.mrb[0].mxu0
      %v1010 = vadd.f32 %v913, %v1009
      %v1011 = vpop.f32.mrb[0].mxu0
      %v1012 = vpop.f32.mrb[0].mxu0
      %v1013 = vadd.f32 %v916, %v1012
      %v1014 = vpop.f32.mrb[0].mxu0
      %1015 = vmatprep.mubr.bf16.mxu0 0
      %1016 = vmatmul.mubr.bf16.gmra.mrb[0].mxu0 %v464
      %v1017 = vpop.f32.mrb[0].mxu0
      %v1018 = vadd.f32 %v921, %v1017
      %v1019 = vpop.f32.mrb[0].mxu0
      %v1020 = vpop.f32.mrb[0].mxu0
      %v1021 = vadd.f32 %v924, %v1020
      %v1022 = vpop.f32.mrb[0].mxu0
      %1023 = vmatprep.mubr.bf16.mxu0 0
      %1024 = vmatmul.mubr.bf16.gmra.mrb[0].mxu0 %v469
      %v1025 = vpop.f32.mrb[0].mxu0
      %v1026 = vadd.f32 %v929, %v1025
      %v1027 = vpop.f32.mrb[0].mxu0
      %v1028 = vpop.f32.mrb[0].mxu0
      %v1029 = vadd.f32 %v932, %v1028
      %v1030 = vpop.f32.mrb[0].mxu0
      %1031 = vmatprep.mubr.bf16.mxu0 0
      %1032 = vmatmul.mubr.bf16.gmra.mrb[0].mxu0 %v474
      %v1033 = vpop.f32.mrb[0].mxu0
      %v1034 = vadd.f32 %v937, %v1033
      %v1035 = vpop.f32.mrb[0].mxu0
      %v1036 = vpop.f32.mrb[0].mxu0
      %v1037 = vadd.f32 %v940, %v1036
      %v1038 = vpop.f32.mrb[0].mxu0
      %1039 = vmatprep.mubr.bf16.mxu0 0
      %1040 = vmatmul.mubr.bf16.gmra.mrb[0].mxu0 %v479
      %v1041 = vpop.f32.mrb[0].mxu0
      %v1042 = vadd.f32 %v945, %v1041
      %v1043 = vpop.f32.mrb[0].mxu0
      %v1044 = vpop.f32.mrb[0].mxu0
      %v1045 = vadd.f32 %v948, %v1044
      %v1046 = vpop.f32.mrb[0].mxu0
      %1047 = vmatprep.mubr.bf16.mxu0 0
      %1048 = vmatmul.mubr.bf16.gmra.mrb[0].mxu0 %v484
      %v1049 = vpop.f32.mrb[0].mxu0
      %v1050 = vadd.f32 %v953, %v1049
      %v1051 = vpop.f32.mrb[0].mxu0
      %v1052 = vpop.f32.mrb[0].mxu0
      %v1053 = vadd.f32 %v956, %v1052
      %v1054 = vpop.f32.mrb[0].mxu0
      %1055 = vdwg.mxu0
      %1056 = vst [vmem:[%s182] sm:$0xff] %v994
      %1057 = vst [vmem:[%s182 + $0x8] sm:$0xff] %v997
      %1058 = vst [vmem:[%s182 + $0x10] sm:$0xff] %v1002
      %1059 = vst [vmem:[%s182 + $0x18] sm:$0xff] %v1005
      %1060 = vst [vmem:[%s182 + $0x20] sm:$0xff] %v1010
      %1061 = vst [vmem:[%s182 + $0x28] sm:$0xff] %v1013
      %1062 = vst [vmem:[%s182 + $0x30] sm:$0xff] %v1018
      %1063 = vst [vmem:[%s182 + $0x38] sm:$0xff] %v1021
      %1064 = vst [vmem:[%s182 + $0x40] sm:$0xff] %v1026
      %1065 = vst [vmem:[%s182 + $0x48] sm:$0xff] %v1029
      %1066 = vst [vmem:[%s182 + $0x50] sm:$0xff] %v1034
      %1067 = vst [vmem:[%s182 + $0x58] sm:$0xff] %v1037
      %1068 = vst [vmem:[%s182 + $0x60] sm:$0xff] %v1042
      %1069 = vst [vmem:[%s182 + $0x68] sm:$0xff] %v1045
      %1070 = vst [vmem:[%s182 + $0x70] sm:$0xff] %v1050
      %1071 = vst [vmem:[%s182 + $0x78] sm:$0xff] %v1053
      %v1072 = vadd.f32 %v994, %v997
      %v1073 = vadd.f32 %v1072, %v1002
      %v1074 = vadd.f32 %v1073, %v1005
      %v1075 = vadd.f32 %v1074, %v1010
      %v1076 = vadd.f32 %v1075, %v1013
      %v1077 = vadd.f32 %v1076, %v1018
      %v1078 = vadd.f32 %v1077, %v1021
      %v1079 = vadd.f32 %v1078, %v1026
      %v1080 = vadd.f32 %v1079, %v1029
      %v1081 = vadd.f32 %v1080, %v1034
      %v1082 = vadd.f32 %v1081, %v1037
      %v1083 = vadd.f32 %v1082, %v1042
      %v1084 = vadd.f32 %v1083, %v1045
      %v1085 = vadd.f32 %v1084, %v1050
      %v1086 = vadd.f32 %v1085, %v1053
      %v1087 = vrot.slane %v1086, 4
      %v1088 = vadd.f32 %v1086, %v1087
      %v1089 = vrot.slane %v1088, 2
      %v1090 = vadd.f32 %v1088, %v1089
      %v1091 = vrot.slane %v1090, 1
      %v1092 = vadd.f32 %v1090, %v1091
      %v1093 = vmul.f32 %v994, %v994
      %v1094 = vmul.f32 %v997, %v997
      %v1095 = vmul.f32 %v1002, %v1002
      %v1096 = vmul.f32 %v1005, %v1005
      %v1097 = vmul.f32 %v1010, %v1010
      %v1098 = vmul.f32 %v1013, %v1013
      %v1099 = vmul.f32 %v1018, %v1018
      %v1100 = vmul.f32 %v1021, %v1021
      %v1101 = vmul.f32 %v1026, %v1026
      %v1102 = vmul.f32 %v1029, %v1029
      %v1103 = vmul.f32 %v1034, %v1034
      %v1104 = vmul.f32 %v1037, %v1037
      %v1105 = vmul.f32 %v1042, %v1042
      %v1106 = vmul.f32 %v1045, %v1045
      %v1107 = vmul.f32 %v1050, %v1050
      %v1108 = vmul.f32 %v1053, %v1053
      %v1109 = vadd.f32 %v1093, %v1094
      %v1110 = vadd.f32 %v1109, %v1095
      %v1111 = vadd.f32 %v1110, %v1096
      %v1112 = vadd.f32 %v1111, %v1097
      %v1113 = vadd.f32 %v1112, %v1098
      %v1114 = vadd.f32 %v1113, %v1099
      %v1115 = vadd.f32 %v1114, %v1100
      %v1116 = vadd.f32 %v1115, %v1101
      %v1117 = vadd.f32 %v1116, %v1102
      %v1118 = vadd.f32 %v1117, %v1103
      %v1119 = vadd.f32 %v1118, %v1104
      %v1120 = vadd.f32 %v1119, %v1105
      %v1121 = vadd.f32 %v1120, %v1106
      %v1122 = vadd.f32 %v1121, %v1107
      %v1123 = vadd.f32 %v1122, %v1108
      %v1124 = vrot.slane %v1123, 4
      %v1125 = vadd.f32 %v1123, %v1124
      %v1126 = vrot.slane %v1125, 2
      %v1127 = vadd.f32 %v1125, %v1126
      %v1128 = vrot.slane %v1127, 1
      %v1129 = vadd.f32 %v1127, %v1128
      %vm1130 = vcmask 1040384
      %v1131 = vsel %vm1130, %v1092, %v1129
      %vm1132 = vcmask 1041408
      %v1133 = vsel %vm1132, %v1131, 0.0
      %1134 = vst [vmem:[%s187] sm:$0xff] %v1133
      %s1135 = smul.u32 16, %s15
      %p1136 = scmp.lt.s32.totalorder %s1135, 31
      %s1137 = scalar_select %p1136, %s1135, 31
      %s1138 = smul.addr %s1137, 8
      %s1139 = scalar_lea.vmem %s2, %s1138
      %p1140 = scmp.lt.s32.totalorder %s15, 1
      %s1141 = scalar_select %p1140, %s15, 1
      %s1142 = smul.addr %s1141, 8
      %s1143 = scalar_lea.vmem %s3, %s1142
      // Predicated region
      $region29: #{cnn_onset_forward.7} parent=27 // pred_check
        %p1144 = pneg %p80
      $region30: #{cnn_onset_forward.7} parent=27 // pred_check_branch
        %1146 = sbr.rel (%p1144) target = $region32
      $region31: #{cnn_onset_forward.7} parent=27 // pred_region
        %s1147 = smul.u32 16, %s15
      $region32: #{cnn_onset_forward.7} parent=27 // pred_fallthru
        _
      // Predicated region
      $region33: #{cnn_onset_forward.7} parent=27 // pred_check
        %p1148 = pneg %p106
      $region34: #{cnn_onset_forward.7} parent=27 // pred_check_branch
        %1150 = sbr.rel (%p1148) target = $region36
      $region35: #{cnn_onset_forward.7} parent=27 // pred_region
        _
      $region36: #{cnn_onset_forward.7} parent=27 // pred_fallthru
        _
    $region28: #{cnn_onset_forward.7} parent=5 // pred_fallthru
      _
    %p1151 = scmp.le.s32.totalorder 2, %s10
    // Predicated region
    $region37: #{cnn_onset_forward.7} parent=5 // pred_check
      %p1152 = pneg %p1151
    $region38: #{cnn_onset_forward.7} parent=5 // pred_check_branch
      %1154 = sbr.rel (%p1152) target = $region40
    $region39: #{cnn_onset_forward.7} parent=5 // pred_region
      %s1155 = ssub.s32 %s10, 2
      // Predicated region
      $region41: #{cnn_onset_forward.7} parent=39 // pred_check
        %p1156 = pneg %p86
      $region42: #{cnn_onset_forward.7} parent=39 // pred_check_branch
        %1158 = sbr.rel (%p1156) target = $region44
      $region43: #{cnn_onset_forward.7} parent=39 // pred_region
        %s1159 = smul.u32 16, %s16
        %p1160 = scmp.lt.s32.totalorder %s1159, 31
        %s1161 = scalar_select %p1160, %s1159, 31
        %s1162 = smul.addr %s1161, 8
        %s1163 = scalar_lea.vmem %s2, %s1162
      $region44: #{cnn_onset_forward.7} parent=39 // pred_fallthru
        _
      // Predicated region
      $region45: #{cnn_onset_forward.7} parent=39 // pred_check
        %p1164 = pneg %p112
      $region46: #{cnn_onset_forward.7} parent=39 // pred_check_branch
        %1166 = sbr.rel (%p1164) target = $region48
      $region47: #{cnn_onset_forward.7} parent=39 // pred_region
        %p1167 = scmp.lt.s32.totalorder %s16, 1
        %s1168 = scalar_select %p1167, %s16, 1
        %s1169 = smul.addr %s1168, 8
        %s1170 = scalar_lea.vmem %s3, %s1169
      $region48: #{cnn_onset_forward.7} parent=39 // pred_fallthru
        _
    $region40: #{cnn_onset_forward.7} parent=5 // pred_fallthru
      _
  $region6: #{cnn_onset_forward.7} parent=0 // loop_footer
    %s14 = sadd.s32 1, %s10
  $region7: #{cnn_onset_forward.7} parent=0 // loop_footer_branch
    %9 = sbr.rel target = $region3
  $region8: #{cnn_onset_forward.7} parent=0 // loop_exit
    _

// kernel: cnn_onset_forward.9
$region0: #{cnn_onset_forward.9}
  #allocation0 [shape = 'u32[]', space=smem, size = 0x4, offset = 0x4, fixed_abs, tag = 'smem constant byte address 0x4 - core index']
  #allocation1 [shape = 'u32[144,128]{1,0:T(1,128)}', space=vmem, size = 0x12000, scoped, tag = 'internal scratch']
  %s0 = inlined_call_operand.vmem [shape: bf16[256,384], index: 0, kind: input, shape index: {}]
  %s1 = inlined_call_operand.vmem [shape: bf16[384,128], index: 1, kind: input, shape index: {}]
  %s2 = inlined_call_operand.vmem [shape: f32[1,128], index: 2, kind: input, shape index: {}]
  %s3 = inlined_call_operand.vmem [shape: f32[256,128], index: 3, kind: output, shape index: {}]
  %s4 = sld [smem:[#allocation0]]
  $region45: #{cnn_onset_forward.9} parent=0
    _
  %s6 = ssub.s32 1, %s4
  %s7 = scalar_select 0, %s6, %s4
  loop: start=0, step=1, limit=4
  $region2: #{cnn_onset_forward.9} parent=0 // loop_pre_header
    _
  $region3: #{cnn_onset_forward.9} parent=0 // loop_header
    %s9 = sphi 0, %s13
    %p10 = scmp.ge.s32.totalorder %s9, 4
    %s19 = sphi 0, %s21
    %s22 = sphi 0, %s19
    %s23 = sphi 0, %s22
    %s39 = sphi 0, %s23
    %s43 = sphi 0, %s43
    %s45 = sphi 0, %s43
    %s46 = sphi 0, %s45
    %s60 = sphi 0, %s46
    %s64 = sphi 0, %s64
    %s66 = sphi 0, %s64
    %s67 = sphi 0, %s66
    %s81 = sphi 0, %s67
    %s87 = sphi 0, %s89
    %s90 = sphi 0, %s87
    %s91 = sphi 0, %s90
    %s107 = sphi 0, %s91
  $region4: #{cnn_onset_forward.9} parent=0 // loop_header_branch
    %12 = sbr.rel (%p10) target = $region8
  $region5: #{cnn_onset_forward.9} parent=0 // loop_body
    %s14 = ssub.s32 %s9, 1
    %s15 = ssub.s32 %s9, 2
    %s16 = sadd.s32 %s9, 1
    %s17 = ssub.s32 %s9, %s16
    %p18 = scmp.eq.s32.totalorder %s17, 0
    %s20 = sadd.s32 %s19, 1
    %s21 = scalar_select %p18, %s19, %s20
    %p24 = pneg %p18
    %p25 = scmp.eq.s32.totalorder %s9, 1
    %p26 = por %p24, %p25
    %p27 = scmp.ne.s32.totalorder %s19, %s22
    %p28 = scmp.eq.s32.totalorder %s9, 0
    %p29 = por %p27, %p28
    %p30 = scmp.ne.s32.totalorder %s19, %s22
    %p31 = scmp.eq.s32.totalorder %s14, 1
    %p32 = por %p30, %p31
    %p33 = scmp.ne.s32.totalorder %s22, %s23
    %p34 = scmp.eq.s32.totalorder %s14, 0
    %p35 = por %p33, %p34
    %p36 = scmp.ne.s32.totalorder %s22, %s23
    %p37 = scmp.eq.s32.totalorder %s15, 1
    %p38 = por %p36, %p37
    %p40 = scmp.ne.s32.totalorder %s23, %s39
    %p41 = scmp.eq.s32.totalorder %s15, 0
    %p42 = por %p40, %p41
    %s44 = sadd.s32 %s43, 1
    %p47 = scmp.eq.s32.totalorder %s9, 1
    %p48 = scmp.ne.s32.totalorder %s43, %s45
    %p49 = scmp.eq.s32.totalorder %s9, 0
    %p50 = por %p48, %p49
    %p51 = scmp.ne.s32.totalorder %s43, %s45
    %p52 = scmp.eq.s32.totalorder %s14, 1
    %p53 = por %p51, %p52
    %p54 = scmp.ne.s32.totalorder %s45, %s46
    %p55 = scmp.eq.s32.totalorder %s14, 0
    %p56 = por %p54, %p55
    %p57 = scmp.ne.s32.totalorder %s45, %s46
    %p58 = scmp.eq.s32.totalorder %s15, 1
    %p59 = por %p57, %p58
    %p61 = scmp.ne.s32.totalorder %s46, %s60
    %p62 = scmp.eq.s32.totalorder %s15, 0
    %p63 = por %p61, %p62
    %s65 = sadd.s32 %s64, 1
    %p68 = scmp.eq.s32.totalorder %s9, 1
    %p69 = scmp.ne.s32.totalorder %s64, %s66
    %p70 = scmp.eq.s32.totalorder %s9, 0
    %p71 = por %p69, %p70
    %p72 = scmp.ne.s32.totalorder %s64, %s66
    %p73 = scmp.eq.s32.totalorder %s14, 1
    %p74 = por %p72, %p73
    %p75 = scmp.ne.s32.totalorder %s66, %s67
    %p76 = scmp.eq.s32.totalorder %s14, 0
    %p77 = por %p75, %p76
    %p78 = scmp.ne.s32.totalorder %s66, %s67
    %p79 = scmp.eq.s32.totalorder %s15, 1
    %p80 = por %p78, %p79
    %p82 = scmp.ne.s32.totalorder %s67, %s81
    %p83 = scmp.eq.s32.totalorder %s15, 0
    %p84 = por %p82, %p83
    %s85 = ssub.s32 %s9, %s16
    %p86 = scmp.eq.s32.totalorder %s85, 0
    %s88 = sadd.s32 %s87, 1
    %s89 = scalar_select %p86, %s87, %s88
    %p92 = pneg %p86
    %p93 = scmp.eq.s32.totalorder %s9, 1
    %p94 = por %p92, %p93
    %p95 = scmp.ne.s32.totalorder %s87, %s90
    %p96 = scmp.eq.s32.totalorder %s9, 0
    %p97 = por %p95, %p96
    %p98 = scmp.ne.s32.totalorder %s87, %s90
    %p99 = scmp.eq.s32.totalorder %s14, 1
    %p100 = por %p98, %p99
    %p101 = scmp.ne.s32.totalorder %s90, %s91
    %p102 = scmp.eq.s32.totalorder %s14, 0
    %p103 = por %p101, %p102
    %p104 = scmp.ne.s32.totalorder %s90, %s91
    %p105 = scmp.eq.s32.totalorder %s15, 1
    %p106 = por %p104, %p105
    %p108 = scmp.ne.s32.totalorder %s91, %s107
    %p109 = scmp.eq.s32.totalorder %s15, 0
    %p110 = por %p108, %p109
    %p111 = scmp.le.s32.totalorder 1, %s9
    %p112 = scmp.lt.s32.totalorder %s9, 3
    %p113 = pnand %p111, %p112
    %p114 = pneg %p113
    // Predicated region
    $region9: #{cnn_onset_forward.9} parent=5 // pred_check
      _
    $region10: #{cnn_onset_forward.9} parent=5 // pred_check_branch
      %116 = sbr.rel (%p113) target = $region12
    $region11: #{cnn_onset_forward.9} parent=5 // pred_region
      %s117 = ssub.s32 %s9, 1
      // Predicated region
      $region13: #{cnn_onset_forward.9} parent=11 // pred_check
        %p118 = pneg %p56
      $region14: #{cnn_onset_forward.9} parent=11 // pred_check_branch
        %120 = sbr.rel (%p118) target = $region16
      $region15: #{cnn_onset_forward.9} parent=11 // pred_region
        _
      $region16: #{cnn_onset_forward.9} parent=11 // pred_fallthru
        _
      // Predicated region
      $region17: #{cnn_onset_forward.9} parent=11 // pred_check
        %p121 = pneg %p77
      $region18: #{cnn_onset_forward.9} parent=11 // pred_check_branch
        %123 = sbr.rel (%p121) target = $region20
      $region19: #{cnn_onset_forward.9} parent=11 // pred_region
        _
      $region20: #{cnn_onset_forward.9} parent=11 // pred_fallthru
        _
    $region12: #{cnn_onset_forward.9} parent=5 // pred_fallthru
      _
    %p124 = scmp.lt.s32.totalorder %s9, 2
    // Predicated region
    $region21: #{cnn_onset_forward.9} parent=5 // pred_check
      %p125 = pneg %p124
    $region22: #{cnn_onset_forward.9} parent=5 // pred_check_branch
      %127 = sbr.rel (%p125) target = $region24
    $region23: #{cnn_onset_forward.9} parent=5 // pred_region
      // Predicated region
      $region25: #{cnn_onset_forward.9} parent=23 // pred_check
        %p128 = pneg %p29
      $region26: #{cnn_onset_forward.9} parent=23 // pred_check_branch
        %130 = sbr.rel (%p128) target = $region28
      $region27: #{cnn_onset_forward.9} parent=23 // pred_region
        %s131 = smul.u32 16, %s9
        %p132 = scmp.lt.s32.totalorder %s131, 31
        %s133 = scalar_select %p132, %s131, 31
        %s134 = smul.addr %s133, 3
        %s135 = smul.addr %s134, 4
        %s136 = scalar_lea.vmem %s0, %s135
        %s137 = smul.u32 16, %s9
      $region28: #{cnn_onset_forward.9} parent=23 // pred_fallthru
        _
    $region24: #{cnn_onset_forward.9} parent=5 // pred_fallthru
      _
    %p138 = scmp.le.s32.totalorder 1, %s9
    %p139 = scmp.lt.s32.totalorder %s9, 3
    %p140 = pnand %p138, %p139
    %p141 = pneg %p140
    // Predicated region
    $region29: #{cnn_onset_forward.9} parent=5 // pred_check
      _
    $region30: #{cnn_onset_forward.9} parent=5 // pred_check_branch
      %143 = sbr.rel (%p140) target = $region32
    $region31: #{cnn_onset_forward.9} parent=5 // pred_region
      %s144 = ssub.s32 %s9, 1
      %s145 = smul.u32 16, %s14
      %p146 = scmp.lt.s32.totalorder %s145, 31
      %s147 = scalar_select %p146, %s145, 31
      %s148 = smul.addr %s147, 3
      %s149 = smul.addr %s148, 4
      %s150 = scalar_lea.vmem %s0, %s149
      %p151 = pneg %p35
      %p152 = pneg %p32
      %p153 = pneg %p56
      %p154 = pneg %p53
      %p155 = pneg %p77
      %p156 = pneg %p74
      %p157 = pneg %p103
      %p158 = pneg %p100
      %s159 = smul.u32 16, %s14
      %p160 = scmp.lt.s32.totalorder %s159, 31
      %s161 = scalar_select %p160, %s159, 31
      %s162 = smul.addr %s161, 8
      %s163 = scalar_lea.vmem %s3, %s162
      %s164 = smul.u32 16, %s14
      %p165 = scmp.lt.s32.totalorder %s164, 31
      %s166 = scalar_select %p165, %s164, 31
      %s167 = smul.addr %s166, 3
      %s168 = smul.addr %s167, 4
      %s169 = scalar_lea.vmem %s0, %s168
      %s170 = smul.u32 16, %s14
      %s171 = smul.u32 16, %s14
      %p172 = scmp.lt.s32.totalorder %s171, 31
      %s173 = scalar_select %p172, %s171, 31
      %s174 = smul.addr %s173, 8
      %s175 = scalar_lea.vmem %s3, %s174
      %s176 = smul.u32 16, %s14
      %v178 = vld [vmem:[%s169] sm:$0xff]
      %v179 = vld [vmem:[%s169 + $0x8] sm:$0xf]
      %v180 = vld [vmem:[%s169 + $0xc] sm:$0xff]
      %v181 = vld [vmem:[%s169 + $0x14] sm:$0xf]
      %v182 = vld [vmem:[%s169 + $0x18] sm:$0xff]
      %v183 = vld [vmem:[%s169 + $0x20] sm:$0xf]
      %v184 = vld [vmem:[%s169 + $0x24] sm:$0xff]
      %v185 = vld [vmem:[%s169 + $0x2c] sm:$0xf]
      %v186 = vld [vmem:[%s169 + $0x30] sm:$0xff]
      %v187 = vld [vmem:[%s169 + $0x38] sm:$0xf]
      %v188 = vld [vmem:[%s169 + $0x3c] sm:$0xff]
      %v189 = vld [vmem:[%s169 + $0x44] sm:$0xf]
      %v190 = vld [vmem:[%s169 + $0x48] sm:$0xff]
      %v191 = vld [vmem:[%s169 + $0x50] sm:$0xf]
      %v192 = vld [vmem:[%s169 + $0x54] sm:$0xff]
      %v193 = vld [vmem:[%s169 + $0x5c] sm:$0xf]
      %v194 = vld [vmem:[%s169 + $0x60] sm:$0xff]
      %v195 = vld [vmem:[%s169 + $0x68] sm:$0xf]
      %v196 = vld [vmem:[%s169 + $0x6c] sm:$0xff]
      %v197 = vld [vmem:[%s169 + $0x74] sm:$0xf]
      %v198 = vld [vmem:[%s169 + $0x78] sm:$0xff]
      %v199 = vld [vmem:[%s169 + $0x80] sm:$0xf]
      %v200 = vld [vmem:[%s169 + $0x84] sm:$0xff]
      %v201 = vld [vmem:[%s169 + $0x8c] sm:$0xf]
      %v202 = vld [vmem:[%s169 + $0x90] sm:$0xff]
      %v203 = vld [vmem:[%s169 + $0x98] sm:$0xf]
      %v204 = vld [vmem:[%s169 + $0x9c] sm:$0xff]
      %v205 = vld [vmem:[%s169 + $0xa4] sm:$0xf]
      %v206 = vld [vmem:[%s169 + $0xa8] sm:$0xff]
      %v207 = vld [vmem:[%s169 + $0xb0] sm:$0xf]
      %v208 = vld [vmem:[%s169 + $0xb4] sm:$0xff]
      %v209 = vld [vmem:[%s169 + $0xbc] sm:$0xf]
      %v210 = vld [vmem:[%s1] sm:$0xf]
      %v211 = vld [vmem:[%s1 + $0x4] sm:$0xf]
      %v212 = vld [vmem:[%s1 + $0x8] sm:$0xf]
      %v213 = vld [vmem:[%s1 + $0xc] sm:$0xf]
      %v214 = vld [vmem:[%s1 + $0x10] sm:$0xf]
      %v215 = vld [vmem:[%s1 + $0x14] sm:$0xf]
      %v216 = vld [vmem:[%s1 + $0x18] sm:$0xf]
      %v217 = vld [vmem:[%s1 + $0x1c] sm:$0xf]
      %v218 = vld [vmem:[%s1 + $0x20] sm:$0xf]
      %v219 = vld [vmem:[%s1 + $0x24] sm:$0xf]
      %v220 = vld [vmem:[%s1 + $0x28] sm:$0xf]
      %v221 = vld [vmem:[%s1 + $0x2c] sm:$0xf]
      %v222 = vld [vmem:[%s1 + $0x30] sm:$0xf]
      %v223 = vld [vmem:[%s1 + $0x34] sm:$0xf]
      %v224 = vld [vmem:[%s1 + $0x38] sm:$0xf]
      %v225 = vld [vmem:[%s1 + $0x3c] sm:$0xf]
      %v226 = vld [vmem:[%s1 + $0x40] sm:$0xf]
      %v227 = vld [vmem:[%s1 + $0x44] sm:$0xf]
      %v228 = vld [vmem:[%s1 + $0x48] sm:$0xf]
      %v229 = vld [vmem:[%s1 + $0x4c] sm:$0xf]
      %v230 = vld [vmem:[%s1 + $0x50] sm:$0xf]
      %v231 = vld [vmem:[%s1 + $0x54] sm:$0xf]
      %v232 = vld [vmem:[%s1 + $0x58] sm:$0xf]
      %v233 = vld [vmem:[%s1 + $0x5c] sm:$0xf]
      %v234 = vld [vmem:[%s1 + $0x60] sm:$0xf]
      %v235 = vld [vmem:[%s1 + $0x64] sm:$0xf]
      %v236 = vld [vmem:[%s1 + $0x68] sm:$0xf]
      %v237 = vld [vmem:[%s1 + $0x6c] sm:$0xf]
      %v238 = vld [vmem:[%s1 + $0x70] sm:$0xf]
      %v239 = vld [vmem:[%s1 + $0x74] sm:$0xf]
      %v240 = vld [vmem:[%s1 + $0x78] sm:$0xf]
      %v241 = vld [vmem:[%s1 + $0x7c] sm:$0xf]
      %v242 = vld [vmem:[%s1 + $0x80] sm:$0xf]
      %v243 = vld [vmem:[%s1 + $0x84] sm:$0xf]
      %v244 = vld [vmem:[%s1 + $0x88] sm:$0xf]
      %v245 = vld [vmem:[%s1 + $0x8c] sm:$0xf]
      %v246 = vld [vmem:[%s1 + $0x90] sm:$0xf]
      %v247 = vld [vmem:[%s1 + $0x94] sm:$0xf]
      %v248 = vld [vmem:[%s1 + $0x98] sm:$0xf]
      %v249 = vld [vmem:[%s1 + $0x9c] sm:$0xf]
      %v250 = vld [vmem:[%s1 + $0xa0] sm:$0xf]
      %v251 = vld [vmem:[%s1 + $0xa4] sm:$0xf]
      %v252 = vld [vmem:[%s1 + $0xa8] sm:$0xf]
      %v253 = vld [vmem:[%s1 + $0xac] sm:$0xf]
      %v254 = vld [vmem:[%s1 + $0xb0] sm:$0xf]
      %v255 = vld [vmem:[%s1 + $0xb4] sm:$0xf]
      %v256 = vld [vmem:[%s1 + $0xb8] sm:$0xf]
      %v257 = vld [vmem:[%s1 + $0xbc] sm:$0xf]
      %v258 = vld [vmem:[%s2] sm:$0x1]
      %v260 = vlaneseq
      %v261 = vshrl.u32 %v260, 7
      %v262 = vsub.s32 0, %v261
      %v263 = vrot.slane %v258, %v262
      %v297 = vunpack.c.l.b16 %v178
      %v298 = vunpack.c.h.b16 %v178
      %v299 = vunpack.c.l.b16 %v179
      %v300 = vunpack.c.l.b16 %v180
      %v301 = vunpack.c.h.b16 %v180
      %v302 = vunpack.c.l.b16 %v181
      %v303 = vunpack.c.l.b16 %v182
      %v304 = vunpack.c.h.b16 %v182
      %v305 = vunpack.c.l.b16 %v183
      %v306 = vunpack.c.l.b16 %v184
      %v307 = vunpack.c.h.b16 %v184
      %v308 = vunpack.c.l.b16 %v185
      %v309 = vunpack.c.l.b16 %v186
      %v310 = vunpack.c.h.b16 %v186
      %v311 = vunpack.c.l.b16 %v187
      %v312 = vunpack.c.l.b16 %v188
      %v313 = vunpack.c.h.b16 %v188
      %v314 = vunpack.c.l.b16 %v189
      %v315 = vunpack.c.l.b16 %v190
      %v316 = vunpack.c.h.b16 %v190
      %v317 = vunpack.c.l.b16 %v191
      %v318 = vunpack.c.l.b16 %v192
      %v319 = vunpack.c.h.b16 %v192
      %v320 = vunpack.c.l.b16 %v193
      %v321 = vunpack.c.l.b16 %v194
      %v322 = vunpack.c.h.b16 %v194
      %v323 = vunpack.c.l.b16 %v195
      %v324 = vunpack.c.l.b16 %v196
      %v325 = vunpack.c.h.b16 %v196
      %v326 = vunpack.c.l.b16 %v197
      %v327 = vunpack.c.l.b16 %v198
      %v328 = vunpack.c.h.b16 %v198
      %v329 = vunpack.c.l.b16 %v199
      %v330 = vunpack.c.l.b16 %v200
      %v331 = vunpack.c.h.b16 %v200
      %v332 = vunpack.c.l.b16 %v201
      %v333 = vunpack.c.l.b16 %v202
      %v334 = vunpack.c.h.b16 %v202
      %v335 = vunpack.c.l.b16 %v203
      %v336 = vunpack.c.l.b16 %v204
      %v337 = vunpack.c.h.b16 %v204
      %v338 = vunpack.c.l.b16 %v205
      %v339 = vunpack.c.l.b16 %v206
      %v340 = vunpack.c.h.b16 %v206
      %v341 = vunpack.c.l.b16 %v207
      %v342 = vunpack.c.l.b16 %v208
      %v343 = vunpack.c.h.b16 %v208
      %v344 = vunpack.c.l.b16 %v209
      %v345 = vpack.c.b16 %v300, %v297
      %v346 = vpack.c.b16 %v301, %v298
      %v347 = vpack.c.b16 %v302, %v299
      %v348 = vpack.c.b16 %v306, %v303
      %v349 = vpack.c.b16 %v307, %v304
      %v350 = vpack.c.b16 %v308, %v305
      %v351 = vpack.c.b16 %v312, %v309
      %v352 = vpack.c.b16 %v313, %v310
      %v353 = vpack.c.b16 %v314, %v311
      %v354 = vpack.c.b16 %v318, %v315
      %v355 = vpack.c.b16 %v319, %v316
      %v356 = vpack.c.b16 %v320, %v317
      %v357 = vpack.c.b16 %v324, %v321
      %v358 = vpack.c.b16 %v325, %v322
      %v359 = vpack.c.b16 %v326, %v323
      %v360 = vpack.c.b16 %v330, %v327
      %v361 = vpack.c.b16 %v331, %v328
      %v362 = vpack.c.b16 %v332, %v329
      %v363 = vpack.c.b16 %v336, %v333
      %v364 = vpack.c.b16 %v337, %v334
      %v365 = vpack.c.b16 %v338, %v335
      %v366 = vpack.c.b16 %v342, %v339
      %v367 = vpack.c.b16 %v343, %v340
      %v368 = vpack.c.b16 %v344, %v341
      %v441 = vunpack.c.l.b16 %v210
      %v442 = vunpack.c.l.b16 %v211
      %v443 = vunpack.c.l.b16 %v212
      %v444 = vunpack.c.l.b16 %v213
      %v445 = vunpack.c.l.b16 %v214
      %v446 = vunpack.c.l.b16 %v215
      %v447 = vunpack.c.l.b16 %v216
      %v448 = vunpack.c.l.b16 %v217
      %v449 = vunpack.c.l.b16 %v218
      %v450 = vunpack.c.l.b16 %v219
      %v451 = vunpack.c.l.b16 %v220
      %v452 = vunpack.c.l.b16 %v221
      %v453 = vunpack.c.l.b16 %v222
      %v454 = vunpack.c.l.b16 %v223
      %v455 = vunpack.c.l.b16 %v224
      %v456 = vunpack.c.l.b16 %v225
      %v457 = vunpack.c.l.b16 %v226
      %v458 = vunpack.c.l.b16 %v227
      %v459 = vunpack.c.l.b16 %v228
      %v460 = vunpack.c.l.b16 %v229
      %v461 = vunpack.c.l.b16 %v230
      %v462 = vunpack.c.l.b16 %v231
      %v463 = vunpack.c.l.b16 %v232
      %v464 = vunpack.c.l.b16 %v233
      %v465 = vunpack.c.l.b16 %v234
      %v466 = vunpack.c.l.b16 %v235
      %v467 = vunpack.c.l.b16 %v236
      %v468 = vunpack.c.l.b16 %v237
      %v469 = vunpack.c.l.b16 %v238
      %v470 = vunpack.c.l.b16 %v239
      %v471 = vunpack.c.l.b16 %v240
      %v472 = vunpack.c.l.b16 %v241
      %v473 = vunpack.c.l.b16 %v242
      %v474 = vunpack.c.l.b16 %v243
      %v475 = vunpack.c.l.b16 %v244
      %v476 = vunpack.c.l.b16 %v245
      %v477 = vunpack.c.l.b16 %v246
      %v478 = vunpack.c.l.b16 %v247
      %v479 = vunpack.c.l.b16 %v248
      %v480 = vunpack.c.l.b16 %v249
      %v481 = vunpack.c.l.b16 %v250
      %v482 = vunpack.c.l.b16 %v251
      %v483 = vunpack.c.l.b16 %v252
      %v484 = vunpack.c.l.b16 %v253
      %v485 = vunpack.c.l.b16 %v254
      %v486 = vunpack.c.l.b16 %v255
      %v487 = vunpack.c.l.b16 %v256
      %v488 = vunpack.c.l.b16 %v257
      %v489 = vpack.c.b16 %v442, %v441
      %v490 = vpack.c.b16 %v444, %v443
      %v491 = vpack.c.b16 %v446, %v445
      %v492 = vpack.c.b16 %v448, %v447
      %v493 = vpack.c.b16 %v450, %v449
      %v494 = vpack.c.b16 %v452, %v451
      %v495 = vpack.c.b16 %v454, %v453
      %v496 = vpack.c.b16 %v456, %v455
      %v497 = vpack.c.b16 %v458, %v457
      %v498 = vpack.c.b16 %v460, %v459
      %v499 = vpack.c.b16 %v462, %v461
      %v500 = vpack.c.b16 %v464, %v463
      %v501 = vpack.c.b16 %v466, %v465
      %v502 = vpack.c.b16 %v468, %v467
      %v503 = vpack.c.b16 %v470, %v469
      %v504 = vpack.c.b16 %v472, %v471
      %v505 = vpack.c.b16 %v474, %v473
      %v506 = vpack.c.b16 %v476, %v475
      %v507 = vpack.c.b16 %v478, %v477
      %v508 = vpack.c.b16 %v480, %v479
      %v509 = vpack.c.b16 %v482, %v481
      %v510 = vpack.c.b16 %v484, %v483
      %v511 = vpack.c.b16 %v486, %v485
      %v512 = vpack.c.b16 %v488, %v487
      %537 = vmatprep.subr.bf16.mxu0 0
      %538 = vmatpush1.bf16.msra.mxu0 %v489
      %539 = vmatprep.subr.bf16.mxu0 0
      %540 = vmatpush1.bf16.msra.mxu0 %v490
      %541 = vmatprep.subr.bf16.mxu0 0
      %542 = vmatpush1.bf16.msra.mxu0 %v491
      %543 = vmatprep.subr.bf16.mxu0 0
      %544 = vmatpush1.bf16.msra.mxu0 %v492
      %545 = vmatprep.subr.bf16.mxu0 0
      %546 = vmatpush1.bf16.msra.mxu0 %v493
      %547 = vmatprep.subr.bf16.mxu0 0
      %548 = vmatpush1.bf16.msra.mxu0 %v494
      %549 = vmatprep.subr.bf16.mxu0 0
      %550 = vmatpush1.bf16.msra.mxu0 %v495
      %551 = vmatprep.subr.bf16.mxu0 0
      %552 = vmatpush1.bf16.msra.mxu0 %v496
      %553 = vmatprep.subr.bf16.mxu0 0
      %554 = vmatpush1.bf16.msra.mxu0 %v497
      %555 = vmatprep.subr.bf16.mxu0 0
      %556 = vmatpush1.bf16.msra.mxu0 %v498
      %557 = vmatprep.subr.bf16.mxu0 0
      %558 = vmatpush1.bf16.msra.mxu0 %v499
      %559 = vmatprep.subr.bf16.mxu0 0
      %560 = vmatpush1.bf16.msra.mxu0 %v500
      %561 = vmatprep.subr.bf16.mxu0 0
      %562 = vmatpush1.bf16.msra.mxu0 %v501
      %563 = vmatprep.subr.bf16.mxu0 0
      %564 = vmatpush1.bf16.msra.mxu0 %v502
      %565 = vmatprep.subr.bf16.mxu0 0
      %566 = vmatpush1.bf16.msra.mxu0 %v503
      %567 = vmatprep.subr.bf16.mxu0 0
      %568 = vmatpush1.bf16.msra.mxu0 %v504
      %569 = vmatprep.mubr.bf16.mxu0 %v346
      %570 = vmatmul.mubr.bf16.gmra.mrb[0].mxu0 %v345
      %v571 = vpop.f32.mrb[0].mxu0
      %v572 = vadd.f32 %v263, %v571
      %v573 = vpop.f32.mrb[0].mxu0
      %v574 = vpop.f32.mrb[0].mxu0
      %v575 = vadd.f32 %v263, %v574
      %v576 = vpop.f32.mrb[0].mxu0
      %577 = vmatprep.mubr.bf16.mxu0 %v349
      %578 = vmatmul.mubr.bf16.gmra.mrb[0].mxu0 %v348
      %v579 = vpop.f32.mrb[0].mxu0
      %v580 = vadd.f32 %v263, %v579
      %v581 = vpop.f32.mrb[0].mxu0
      %v582 = vpop.f32.mrb[0].mxu0
      %v583 = vadd.f32 %v263, %v582
      %v584 = vpop.f32.mrb[0].mxu0
      %585 = vmatprep.mubr.bf16.mxu0 %v352
      %586 = vmatmul.mubr.bf16.gmra.mrb[0].mxu0 %v351
      %v587 = vpop.f32.mrb[0].mxu0
      %v588 = vadd.f32 %v263, %v587
      %v589 = vpop.f32.mrb[0].mxu0
      %v590 = vpop.f32.mrb[0].mxu0
      %v591 = vadd.f32 %v263, %v590
      %v592 = vpop.f32.mrb[0].mxu0
      %593 = vmatprep.mubr.bf16.mxu0 %v355
      %594 = vmatmul.mubr.bf16.gmra.mrb[0].mxu0 %v354
      %v595 = vpop.f32.mrb[0].mxu0
      %v596 = vadd.f32 %v263, %v595
      %v597 = vpop.f32.mrb[0].mxu0
      %v598 = vpop.f32.mrb[0].mxu0
      %v599 = vadd.f32 %v263, %v598
      %v600 = vpop.f32.mrb[0].mxu0
      %601 = vmatprep.mubr.bf16.mxu0 %v358
      %602 = vmatmul.mubr.bf16.gmra.mrb[0].mxu0 %v357
      %v603 = vpop.f32.mrb[0].mxu0
      %v604 = vadd.f32 %v263, %v603
      %v605 = vpop.f32.mrb[0].mxu0
      %v606 = vpop.f32.mrb[0].mxu0
      %v607 = vadd.f32 %v263, %v606
      %v608 = vpop.f32.mrb[0].mxu0
      %609 = vmatprep.mubr.bf16.mxu0 %v361
      %610 = vmatmul.mubr.bf16.gmra.mrb[0].mxu0 %v360
      %v611 = vpop.f32.mrb[0].mxu0
      %v612 = vadd.f32 %v263, %v611
      %v613 = vpop.f32.mrb[0].mxu0
      %v614 = vpop.f32.mrb[0].mxu0
      %v615 = vadd.f32 %v263, %v614
      %v616 = vpop.f32.mrb[0].mxu0
      %617 = vmatprep.mubr.bf16.mxu0 %v364
      %618 = vmatmul.mubr.bf16.gmra.mrb[0].mxu0 %v363
      %v619 = vpop.f32.mrb[0].mxu0
      %v620 = vadd.f32 %v263, %v619
      %v621 = vpop.f32.mrb[0].mxu0
      %v622 = vpop.f32.mrb[0].mxu0
      %v623 = vadd.f32 %v263, %v622
      %v624 = vpop.f32.mrb[0].mxu0
      %625 = vmatprep.mubr.bf16.mxu0 %v367
      %626 = vmatmul.mubr.bf16.gmra.mrb[0].mxu0 %v366
      %v627 = vpop.f32.mrb[0].mxu0
      %v628 = vadd.f32 %v263, %v627
      %v629 = vpop.f32.mrb[0].mxu0
      %v630 = vpop.f32.mrb[0].mxu0
      %v631 = vadd.f32 %v263, %v630
      %v632 = vpop.f32.mrb[0].mxu0
      %633 = vdwg.mxu0
      %634 = vmatprep.subr.bf16.mxu0 0
      %635 = vmatpush1.bf16.msra.mxu0 %v505
      %636 = vmatprep.subr.bf16.mxu0 0
      %637 = vmatpush1.bf16.msra.mxu0 %v506
      %638 = vmatprep.subr.bf16.mxu0 0
      %639 = vmatpush1.bf16.msra.mxu0 %v507
      %640 = vmatprep.subr.bf16.mxu0 0
      %641 = vmatpush1.bf16.msra.mxu0 %v508
      %642 = vmatprep.subr.bf16.mxu0 0
      %643 = vmatpush1.bf16.msra.mxu0 %v509
      %644 = vmatprep.subr.bf16.mxu0 0
      %645 = vmatpush1.bf16.msra.mxu0 %v510
      %646 = vmatprep.subr.bf16.mxu0 0
      %647 = vmatpush1.bf16.msra.mxu0 %v511
      %648 = vmatprep.subr.bf16.mxu0 0
      %649 = vmatpush1.bf16.msra.mxu0 %v512
      %650 = vmatprep.subr.bf16.mxu0 0
      %651 = vmatpush1.bf16.msra.mxu0 0
      %652 = vmatprep.subr.bf16.mxu0 0
      %653 = vmatpush1.bf16.msra.mxu0 0
      %654 = vmatprep.subr.bf16.mxu0 0
      %655 = vmatpush1.bf16.msra.mxu0 0
      %656 = vmatprep.subr.bf16.mxu0 0
      %657 = vmatpush1.bf16.msra.mxu0 0
      %658 = vmatprep.subr.bf16.mxu0 0
      %659 = vmatpush1.bf16.msra.mxu0 0
      %660 = vmatprep.subr.bf16.mxu0 0
      %661 = vmatpush1.bf16.msra.mxu0 0
      %662 = vmatprep.subr.bf16.mxu0 0
      %663 = vmatpush1.bf16.msra.mxu0 0
      %664 = vmatprep.subr.bf16.mxu0 0
      %665 = vmatpush1.bf16.msra.mxu0 0
      %666 = vmatprep.mubr.bf16.mxu0 0
      %667 = vmatmul.mubr.bf16.gmra.mrb[0].mxu0 %v347
      %v668 = vpop.f32.mrb[0].mxu0
      %v669 = vadd.f32 %v572, %v668
      %v670 = vpop.f32.mrb[0].mxu0
      %v671 = vpop.f32.mrb[0].mxu0
      %v672 = vadd.f32 %v575, %v671
      %v673 = vpop.f32.mrb[0].mxu0
      %674 = vmatprep.mubr.bf16.mxu0 0
      %675 = vmatmul.mubr.bf16.gmra.mrb[0].mxu0 %v350
      %v676 = vpop.f32.mrb[0].mxu0
      %v677 = vadd.f32 %v580, %v676
      %v678 = vpop.f32.mrb[0].mxu0
      %v679 = vpop.f32.mrb[0].mxu0
      %v680 = vadd.f32 %v583, %v679
      %v681 = vpop.f32.mrb[0].mxu0
      %682 = vmatprep.mubr.bf16.mxu0 0
      %683 = vmatmul.mubr.bf16.gmra.mrb[0].mxu0 %v353
      %v684 = vpop.f32.mrb[0].mxu0
      %v685 = vadd.f32 %v588, %v684
      %v686 = vpop.f32.mrb[0].mxu0
      %v687 = vpop.f32.mrb[0].mxu0
      %v688 = vadd.f32 %v591, %v687
      %v689 = vpop.f32.mrb[0].mxu0
      %690 = vmatprep.mubr.bf16.mxu0 0
      %691 = vmatmul.mubr.bf16.gmra.mrb[0].mxu0 %v356
      %v692 = vpop.f32.mrb[0].mxu0
      %v693 = vadd.f32 %v596, %v692
      %v694 = vpop.f32.mrb[0].mxu0
      %v695 = vpop.f32.mrb[0].mxu0
      %v696 = vadd.f32 %v599, %v695
      %v697 = vpop.f32.mrb[0].mxu0
      %698 = vmatprep.mubr.bf16.mxu0 0
      %699 = vmatmul.mubr.bf16.gmra.mrb[0].mxu0 %v359
      %v700 = vpop.f32.mrb[0].mxu0
      %v701 = vadd.f32 %v604, %v700
      %v702 = vpop.f32.mrb[0].mxu0
      %v703 = vpop.f32.mrb[0].mxu0
      %v704 = vadd.f32 %v607, %v703
      %v705 = vpop.f32.mrb[0].mxu0
      %706 = vmatprep.mubr.bf16.mxu0 0
      %707 = vmatmul.mubr.bf16.gmra.mrb[0].mxu0 %v362
      %v708 = vpop.f32.mrb[0].mxu0
      %v709 = vadd.f32 %v612, %v708
      %v710 = vpop.f32.mrb[0].mxu0
      %v711 = vpop.f32.mrb[0].mxu0
      %v712 = vadd.f32 %v615, %v711
      %v713 = vpop.f32.mrb[0].mxu0
      %714 = vmatprep.mubr.bf16.mxu0 0
      %715 = vmatmul.mubr.bf16.gmra.mrb[0].mxu0 %v365
      %v716 = vpop.f32.mrb[0].mxu0
      %v717 = vadd.f32 %v620, %v716
      %v718 = vpop.f32.mrb[0].mxu0
      %v719 = vpop.f32.mrb[0].mxu0
      %v720 = vadd.f32 %v623, %v719
      %v721 = vpop.f32.mrb[0].mxu0
      %722 = vmatprep.mubr.bf16.mxu0 0
      %723 = vmatmul.mubr.bf16.gmra.mrb[0].mxu0 %v368
      %v724 = vpop.f32.mrb[0].mxu0
      %v725 = vadd.f32 %v628, %v724
      %v726 = vpop.f32.mrb[0].mxu0
      %v727 = vpop.f32.mrb[0].mxu0
      %v728 = vadd.f32 %v631, %v727
      %v729 = vpop.f32.mrb[0].mxu0
      %730 = vdwg.mxu0
      %731 = vst [vmem:[%s175] sm:$0xff] %v669
      %732 = vst [vmem:[%s175 + $0x8] sm:$0xff] %v672
      %733 = vst [vmem:[%s175 + $0x10] sm:$0xff] %v677
      %734 = vst [vmem:[%s175 + $0x18] sm:$0xff] %v680
      %735 = vst [vmem:[%s175 + $0x20] sm:$0xff] %v685
      %736 = vst [vmem:[%s175 + $0x28] sm:$0xff] %v688
      %737 = vst [vmem:[%s175 + $0x30] sm:$0xff] %v693
      %738 = vst [vmem:[%s175 + $0x38] sm:$0xff] %v696
      %739 = vst [vmem:[%s175 + $0x40] sm:$0xff] %v701
      %740 = vst [vmem:[%s175 + $0x48] sm:$0xff] %v704
      %741 = vst [vmem:[%s175 + $0x50] sm:$0xff] %v709
      %742 = vst [vmem:[%s175 + $0x58] sm:$0xff] %v712
      %743 = vst [vmem:[%s175 + $0x60] sm:$0xff] %v717
      %744 = vst [vmem:[%s175 + $0x68] sm:$0xff] %v720
      %745 = vst [vmem:[%s175 + $0x70] sm:$0xff] %v725
      %746 = vst [vmem:[%s175 + $0x78] sm:$0xff] %v728
      %s747 = smul.u32 16, %s14
      %p748 = scmp.lt.s32.totalorder %s747, 31
      %s749 = scalar_select %p748, %s747, 31
      %s750 = smul.addr %s749, 8
      %s751 = scalar_lea.vmem %s3, %s750
      // Predicated region
      $region33: #{cnn_onset_forward.9} parent=31 // pred_check
        %p752 = pneg %p100
      $region34: #{cnn_onset_forward.9} parent=31 // pred_check_branch
        %754 = sbr.rel (%p752) target = $region36
      $region35: #{cnn_onset_forward.9} parent=31 // pred_region
        %s755 = smul.u32 16, %s14
      $region36: #{cnn_onset_forward.9} parent=31 // pred_fallthru
        _
    $region32: #{cnn_onset_forward.9} parent=5 // pred_fallthru
      _
    %p756 = scmp.le.s32.totalorder 2, %s9
    // Predicated region
    $region37: #{cnn_onset_forward.9} parent=5 // pred_check
      %p757 = pneg %p756
    $region38: #{cnn_onset_forward.9} parent=5 // pred_check_branch
      %759 = sbr.rel (%p757) target = $region40
    $region39: #{cnn_onset_forward.9} parent=5 // pred_region
      %s760 = ssub.s32 %s9, 2
      // Predicated region
      $region41: #{cnn_onset_forward.9} parent=39 // pred_check
        %p761 = pneg %p106
      $region42: #{cnn_onset_forward.9} parent=39 // pred_check_branch
        %763 = sbr.rel (%p761) target = $region44
      $region43: #{cnn_onset_forward.9} parent=39 // pred_region
        %s764 = smul.u32 16, %s15
        %p765 = scmp.lt.s32.totalorder %s764, 31
        %s766 = scalar_select %p765, %s764, 31
        %s767 = smul.addr %s766, 8
        %s768 = scalar_lea.vmem %s3, %s767
      $region44: #{cnn_onset_forward.9} parent=39 // pred_fallthru
        _
    $region40: #{cnn_onset_forward.9} parent=5 // pred_fallthru
      _
  $region6: #{cnn_onset_forward.9} parent=0 // loop_footer
    %s13 = sadd.s32 1, %s9
  $region7: #{cnn_onset_forward.9} parent=0 // loop_footer_branch
    %8 = sbr.rel target = $region3
  $region8: #{cnn_onset_forward.9} parent=0 // loop_exit
    _

</llo_original>
